<compile_context>
chip_gen: v7x
topology: tpu7x:2x2x1
jax: 0.10.0
libtpu: 0.0.40
codegen_flags: <defaults>
</compile_context>

<pallas_src>
import functools

import jax
import jax.numpy as jnp
from jax import lax
from jax.experimental import pallas as pl
from jax.experimental.pallas import tpu as pltpu

EPS = 1e-5  # nn.BatchNorm1d default eps


def nas_forward_kernel(x_ref,
                       w1_ref, g1_ref, be1_ref,
                       w2_ref, g2_ref, be2_ref,
                       wf_ref, bf_ref,
                       o_ref,
                       s1, ss1, sc1, sh1,
                       s2, ss2, sc2, sh2,
                       *, batch_size):
    """Grid = (phase, batch_tile).

    phase 0: accumulate layer-1 BN stats over all batch tiles
    phase 1: finalize layer-1 scale/shift, accumulate layer-2 BN stats
    phase 2: finalize layer-2 scale/shift, emit the final Linear output

    BatchNorm uses full-batch statistics (PyTorch training-mode semantics, biased variance).
    The tiny per-tile matmuls are recomputed each phase so no HBM intermediates are needed.
    """
    phase = pl.program_id(0)
    tile = pl.program_id(1)
    inv_b = 1.0 / batch_size

    @pl.when(jnp.logical_and(phase == 0, tile == 0))
    def _init_stats():
        s1[...] = jnp.zeros_like(s1)
        ss1[...] = jnp.zeros_like(ss1)
        s2[...] = jnp.zeros_like(s2)
        ss2[...] = jnp.zeros_like(ss2)

    # Layer-1 pre-activation: bf16 operands on the MXU, f32 accumulate.
    # (No "+ b1": a Linear bias followed by training-mode BN is a mathematical no-op.)
    x_bf = x_ref[...].astype(jnp.bfloat16)
    z1 = jnp.dot(x_bf, w1_ref[...], preferred_element_type=jnp.float32)

    @pl.when(phase == 0)
    def _accum_bn1():
        s1[...] += jnp.sum(z1, axis=0, keepdims=True)
        ss1[...] += jnp.sum(z1 * z1, axis=0, keepdims=True)

    @pl.when(phase >= 1)
    def _phases_1_2():
        @pl.when(jnp.logical_and(phase == 1, tile == 0))
        def _finalize_bn1():
            mean = s1[...] * inv_b
            var = ss1[...] * inv_b - mean * mean          # biased variance
            sc = g1_ref[...] * lax.rsqrt(var + EPS)       # rsqrt -> EUP slot
            sc1[...] = sc
            sh1[...] = be1_ref[...] - mean * sc

        # Folded BN (one FMA) + ReLU, all in f32 on the VPU.
        h1 = jnp.maximum(z1 * sc1[...] + sh1[...], 0.0)
        z2 = jnp.dot(h1.astype(jnp.bfloat16), w2_ref[...],
                     preferred_element_type=jnp.float32)

        @pl.when(phase == 1)
        def _accum_bn2():
            s2[...] += jnp.sum(z2, axis=0, keepdims=True)
            ss2[...] += jnp.sum(z2 * z2, axis=0, keepdims=True)

        @pl.when(jnp.logical_and(phase == 2, tile == 0))
        def _finalize_bn2():
            mean = s2[...] * inv_b
            var = ss2[...] * inv_b - mean * mean
            sc = g2_ref[...] * lax.rsqrt(var + EPS)
            sc2[...] = sc
            sh2[...] = be2_ref[...] - mean * sc

        @pl.when(phase == 2)
        def _emit_output():
            h2 = jnp.maximum(z2 * sc2[...] + sh2[...], 0.0)
            # Final Linear (out_features = 1): VPU multiply + lane reduction instead of an
            # N=1 MXU matmul (which would waste 127/255 of the systolic array + MRF pop).
            out = jnp.sum(h2 * wf_ref[...], axis=-1, keepdims=True) + bf_ref[...]
            o_ref[...] = out.astype(o_ref.dtype)


def _pick_batch_tile(batch, max_tile_b):
    """Pick a batch tile that divides `batch` and respects the (8,128) block-layout rule."""
    if batch <= max_tile_b:
        return batch                       # single full block (always layout-legal)
    for t in (1024, 512, 384, 256, 128):   # multiples of 128 -> clean sublane tiling
        if t <= max_tile_b and batch % t == 0:
            return t
    return batch                           # fallback: single full-batch block


def nas_network_forward(x, params, *, max_tile_b=512):
    """Fused NASNetwork forward. params uses (in, out) layout for cell weights; wf is (1, d_last)."""
    B, fin = x.shape
    d1 = params["w1"].shape[1]
    d2 = params["w2"].shape[1]

    tile_b = _pick_batch_tile(B, max_tile_b)
    n_tiles = B // tile_b
    assert tile_b * n_tiles == B

    # Cast weights for the MXU once here (not per grid step inside the kernel).
    w1 = params["w1"].astype(jnp.bfloat16)
    w2 = params["w2"].astype(jnp.bfloat16)
    # NOTE: b1/b2 are intentionally NOT passed to the kernel (cancelled exactly by BN).

    def resident(arr):  # parameters stay resident in VMEM across the whole grid
        return pl.BlockSpec(arr.shape, lambda p, t: (0, 0))

    kernel = functools.partial(nas_forward_kernel, batch_size=float(B))

    out = pl.pallas_call(
        kernel,
        out_shape=jax.ShapeDtypeStruct((B, 1), jnp.float32),
        grid_spec=pltpu.PrefetchScalarGridSpec(
            num_scalar_prefetch=0,
            grid=(3, n_tiles),   # (phase, batch tile); phase is the outer, sequential axis
            in_specs=[
                pl.BlockSpec((tile_b, fin), lambda p, t: (t, 0)),   # x: one batch tile
                resident(w1), resident(params["g1"]), resident(params["be1"]),
                resident(w2), resident(params["g2"]), resident(params["be2"]),
                resident(params["wf"]), resident(params["bf"]),
            ],
            out_specs=pl.BlockSpec((tile_b, 1), lambda p, t: (t, 0)),
            scratch_shapes=[
                pltpu.VMEM((1, d1), jnp.float32),  # s1   (sum)
                pltpu.VMEM((1, d1), jnp.float32),  # ss1  (sum of squares)
                pltpu.VMEM((1, d1), jnp.float32),  # scale1
                pltpu.VMEM((1, d1), jnp.float32),  # shift1
                pltpu.VMEM((1, d2), jnp.float32),  # s2
                pltpu.VMEM((1, d2), jnp.float32),  # ss2
                pltpu.VMEM((1, d2), jnp.float32),  # scale2
                pltpu.VMEM((1, d2), jnp.float32),  # shift2
            ],
        ),
        compiler_params=pltpu.CompilerParams(
            # Both axes sequential: phase ordering + cross-tile BN-stat carry in scratch.
            # (Megacore batch-parallelism would need per-core partial stats + a combine pass.)
            dimension_semantics=("arbitrary", "arbitrary"),
            vmem_limit_bytes=32 * 1024 * 1024,   # sized for v7x's 64 MiB physical VMEM with headroom
        ),
    )(x, w1, params["g1"], params["be1"],
      w2, params["g2"], params["be2"],
      params["wf"], params["bf"])

    # x.squeeze() in the PyTorch module: (B, 1) -> (B,)
    return out[:, 0]


def init_params(key, input_size, cell_output_dims):
    """Deterministic synthetic init; shapes mirror the PyTorch module (cell weights stored (in, out))."""
    dims = [input_size] + list(cell_output_dims)
    keys = jax.random.split(key, 2 * len(cell_output_dims) + 2)
    p = {}
    ki = 0
    for li, (fi, fo) in enumerate(zip(dims[:-1], dims[1:]), start=1):
        bound = 1.0 / (fi ** 0.5)
        p[f"w{li}"] = jax.random.uniform(keys[ki], (fi, fo), jnp.float32, -bound, bound); ki += 1
        p[f"b{li}"] = jax.random.uniform(keys[ki], (1, fo), jnp.float32, -bound, bound); ki += 1
        p[f"g{li}"] = jnp.ones((1, fo), jnp.float32)    # BN weight (gamma) init = 1
        p[f"be{li}"] = jnp.zeros((1, fo), jnp.float32)  # BN bias (beta) init = 0
    fi = dims[-1]
    bound = 1.0 / (fi ** 0.5)
    p["wf"] = jax.random.uniform(keys[ki], (1, fi), jnp.float32, -bound, bound); ki += 1  # (out=1, in)
    p["bf"] = jax.random.uniform(keys[ki], (1, 1), jnp.float32, -bound, bound); ki += 1
    return p


def reference_f32(x, p):
    """PyTorch training-mode semantics in pure f32 (includes the cell Linear biases)."""
    def cell(h, w, b, g, be):
        z = h @ w + b
        mean = jnp.mean(z, axis=0, keepdims=True)
        var = jnp.mean((z - mean) ** 2, axis=0, keepdims=True)
        zn = (z - mean) / jnp.sqrt(var + EPS) * g + be
        return jnp.maximum(zn, 0.0)
    h = cell(x, p["w1"], p["b1"], p["g1"], p["be1"])
    h = cell(h, p["w2"], p["b2"], p["g2"], p["be2"])
    return jnp.sum(h * p["wf"], axis=-1) + p["bf"][0, 0]


def reference_kernel_math(x, p):
    """Mirrors the kernel's math exactly: bf16 matmul operands, folded BN, no cell biases."""
    def cell(h, w, g, be):
        z = jnp.dot(h.astype(jnp.bfloat16), w.astype(jnp.bfloat16),
                    preferred_element_type=jnp.float32)
        mean = jnp.mean(z, axis=0, keepdims=True)
        var = jnp.mean(z * z, axis=0, keepdims=True) - mean * mean
        scale = g * lax.rsqrt(var + EPS)
        shift = be - mean * scale
        return jnp.maximum(z * scale + shift, 0.0)
    h = cell(x, p["w1"], p["g1"], p["be1"])
    h = cell(h, p["w2"], p["g2"], p["be2"])
    return jnp.sum(h * p["wf"], axis=-1) + p["bf"][0, 0]


if __name__ == "__main__":
    key = jax.random.PRNGKey(0)
    k_x, k_p = jax.random.split(key)

    batch = 256                # small, but exercises multiple batch tiles (tile = 128)
    input_size = 16
    cell_output_dims = [32, 16]   # two NASCells

    x = jax.random.normal(k_x, (batch, input_size), dtype=jnp.float32)
    params = init_params(k_p, input_size, cell_output_dims)

    out = nas_network_forward(x, params, max_tile_b=128)   # -> grid (3 phases, 2 batch tiles)
    out = jax.block_until_ready(out)
    assert out.shape == (batch,), out.shape

    # Tight check against a pure-JAX model of the exact kernel math (bf16 matmuls, folded BN).
    ref_exact = reference_kernel_math(x, params)
    assert jnp.allclose(out, ref_exact, atol=1e-3, rtol=1e-3), \
        float(jnp.max(jnp.abs(out - ref_exact)))

    # Looser sanity check against full-f32 PyTorch-style semantics (bias included) —
    # differences come only from bf16 matmul operands.
    ref32 = reference_f32(x, params)
    assert jnp.allclose(out, ref32, atol=1e-1, rtol=1e-1), \
        float(jnp.max(jnp.abs(out - ref32)))

    print("KERNEL_OK")
</pallas_src>

<mosaic_0001>
module attributes {stable_mosaic.version = 11 : i64} {
  func.func @nas_forward_kernel(%arg0: i32, %arg1: i32, %arg2: memref<128x16xf32, #tpu.memory_space<vmem>>, %arg3: memref<16x32xbf16, #tpu.memory_space<vmem>>, %arg4: memref<1x32xf32, #tpu.memory_space<vmem>>, %arg5: memref<1x32xf32, #tpu.memory_space<vmem>>, %arg6: memref<32x16xbf16, #tpu.memory_space<vmem>>, %arg7: memref<1x16xf32, #tpu.memory_space<vmem>>, %arg8: memref<1x16xf32, #tpu.memory_space<vmem>>, %arg9: memref<1x16xf32, #tpu.memory_space<vmem>>, %arg10: memref<1x1xf32, #tpu.memory_space<vmem>>, %arg11: memref<128x1xf32, #tpu.memory_space<vmem>>, %arg12: memref<1x32xf32, #tpu.memory_space<vmem>>, %arg13: memref<1x32xf32, #tpu.memory_space<vmem>>, %arg14: memref<1x32xf32, #tpu.memory_space<vmem>>, %arg15: memref<1x32xf32, #tpu.memory_space<vmem>>, %arg16: memref<1x16xf32, #tpu.memory_space<vmem>>, %arg17: memref<1x16xf32, #tpu.memory_space<vmem>>, %arg18: memref<1x16xf32, #tpu.memory_space<vmem>>, %arg19: memref<1x16xf32, #tpu.memory_space<vmem>>) attributes {dimension_semantics = [#tpu.dimension_semantics<arbitrary>, #tpu.dimension_semantics<arbitrary>], iteration_bounds = array<i64: 3, 2>, scalar_prefetch = 0 : i64, scratch_operands = 8 : i64, tpu.core_type = #tpu.core_type<tc>, window_params = [{transform_indices = @transform_0, window_bounds = array<i64: 128, 16>}, {pipeline_mode = #tpu.pipeline_mode<synchronous>, transform_indices = @transform_1, window_bounds = array<i64: 16, 32>}, {pipeline_mode = #tpu.pipeline_mode<synchronous>, transform_indices = @transform_2, window_bounds = array<i64: 1, 32>}, {pipeline_mode = #tpu.pipeline_mode<synchronous>, transform_indices = @transform_3, window_bounds = array<i64: 1, 32>}, {pipeline_mode = #tpu.pipeline_mode<synchronous>, transform_indices = @transform_4, window_bounds = array<i64: 32, 16>}, {pipeline_mode = #tpu.pipeline_mode<synchronous>, transform_indices = @transform_5, window_bounds = array<i64: 1, 16>}, {pipeline_mode = #tpu.pipeline_mode<synchronous>, transform_indices = @transform_6, window_bounds = array<i64: 1, 16>}, {pipeline_mode = #tpu.pipeline_mode<synchronous>, transform_indices = @transform_7, window_bounds = array<i64: 1, 16>}, {pipeline_mode = #tpu.pipeline_mode<synchronous>, transform_indices = @transform_8, window_bounds = array<i64: 1, 1>}, {transform_indices = @transform_9, window_bounds = array<i64: 128, 1>}]} {
    %c0_i32 = arith.constant 0 : i32
    %0 = arith.cmpi eq, %arg0, %c0_i32 : i32
    %c0_i32_0 = arith.constant 0 : i32
    %1 = arith.cmpi eq, %arg1, %c0_i32_0 : i32
    %2 = arith.andi %0, %1 : i1
    %3 = arith.extui %2 : i1 to i32
    %c0_i32_1 = arith.constant 0 : i32
    %4 = arith.cmpi ne, %3, %c0_i32_1 : i32
    scf.if %4 {
      %cst_8 = arith.constant 0.000000e+00 : f32
      %15 = vector.broadcast %cst_8 : f32 to vector<1x32xf32>
      %c0_9 = arith.constant 0 : index
      %c0_10 = arith.constant 0 : index
      %16 = vector.load %arg12[%c0_9, %c0_10] : memref<1x32xf32, #tpu.memory_space<vmem>>, vector<1x32xf32>
      tpu.vector_store %arg12[%c0_9, %c0_10], %15 {strides = array<i32>} : memref<1x32xf32, #tpu.memory_space<vmem>>, vector<1x32xf32>,
      %cst_11 = arith.constant 0.000000e+00 : f32
      %17 = vector.broadcast %cst_11 : f32 to vector<1x32xf32>
      %c0_12 = arith.constant 0 : index
      %c0_13 = arith.constant 0 : index
      %18 = vector.load %arg13[%c0_12, %c0_13] : memref<1x32xf32, #tpu.memory_space<vmem>>, vector<1x32xf32>
      tpu.vector_store %arg13[%c0_12, %c0_13], %17 {strides = array<i32>} : memref<1x32xf32, #tpu.memory_space<vmem>>, vector<1x32xf32>,
      %cst_14 = arith.constant 0.000000e+00 : f32
      %19 = vector.broadcast %cst_14 : f32 to vector<1x16xf32>
      %c0_15 = arith.constant 0 : index
      %c0_16 = arith.constant 0 : index
      %20 = vector.load %arg16[%c0_15, %c0_16] : memref<1x16xf32, #tpu.memory_space<vmem>>, vector<1x16xf32>
      tpu.vector_store %arg16[%c0_15, %c0_16], %19 {strides = array<i32>} : memref<1x16xf32, #tpu.memory_space<vmem>>, vector<1x16xf32>,
      %cst_17 = arith.constant 0.000000e+00 : f32
      %21 = vector.broadcast %cst_17 : f32 to vector<1x16xf32>
      %c0_18 = arith.constant 0 : index
      %c0_19 = arith.constant 0 : index
      %22 = vector.load %arg17[%c0_18, %c0_19] : memref<1x16xf32, #tpu.memory_space<vmem>>, vector<1x16xf32>
      tpu.vector_store %arg17[%c0_18, %c0_19], %21 {strides = array<i32>} : memref<1x16xf32, #tpu.memory_space<vmem>>, vector<1x16xf32>,
    } else {
    }
    %c0 = arith.constant 0 : index
    %c0_2 = arith.constant 0 : index
    %5 = vector.load %arg2[%c0, %c0_2] : memref<128x16xf32, #tpu.memory_space<vmem>>, vector<128x16xf32>
    %6 = arith.truncf %5 : vector<128x16xf32> to vector<128x16xbf16>
    %c0_3 = arith.constant 0 : index
    %c0_4 = arith.constant 0 : index
    %7 = vector.load %arg3[%c0_3, %c0_4] : memref<16x32xbf16, #tpu.memory_space<vmem>>, vector<16x32xbf16>
    %cst = arith.constant dense<0.000000e+00> : vector<128x32xf32>
    %8 = tpu.matmul %6, %7, %cst {dimension_numbers = #tpu.dot_dimension_numbers<[1], [0], [0], [1], [0, 0, 1, 1], [], []>} : vector<128x16xbf16>, vector<16x32xbf16>, vector<128x32xf32> -> vector<128x32xf32>
    %c0_i32_5 = arith.constant 0 : i32
    %9 = arith.cmpi eq, %arg0, %c0_i32_5 : i32
    %10 = arith.extui %9 : i1 to i32
    %c0_i32_6 = arith.constant 0 : i32
    %11 = arith.cmpi ne, %10, %c0_i32_6 : i32
    scf.if %11 {
      %c0_8 = arith.constant 0 : index
      %c0_9 = arith.constant 0 : index
      %15 = vector.load %arg12[%c0_8, %c0_9] : memref<1x32xf32, #tpu.memory_space<vmem>>, vector<1x32xf32>
      %cst_10 = arith.constant dense<0.000000e+00> : vector<32xf32>
      %16 = vector.multi_reduction <add>, %8, %cst_10 [0] : vector<128x32xf32> to vector<32xf32>
      %17 = vector.shape_cast %16 : vector<32xf32> to vector<1x32xf32>
      %18 = arith.addf %15, %17 : vector<1x32xf32>
      %c0_11 = arith.constant 0 : index
      %c0_12 = arith.constant 0 : index
      %19 = vector.load %arg12[%c0_11, %c0_12] : memref<1x32xf32, #tpu.memory_space<vmem>>, vector<1x32xf32>
      tpu.vector_store %arg12[%c0_11, %c0_12], %18 {strides = array<i32>} : memref<1x32xf32, #tpu.memory_space<vmem>>, vector<1x32xf32>,
      %c0_13 = arith.constant 0 : index
      %c0_14 = arith.constant 0 : index
      %20 = vector.load %arg13[%c0_13, %c0_14] : memref<1x32xf32, #tpu.memory_space<vmem>>, vector<1x32xf32>
      %21 = arith.mulf %8, %8 : vector<128x32xf32>
      %cst_15 = arith.constant dense<0.000000e+00> : vector<32xf32>
      %22 = vector.multi_reduction <add>, %21, %cst_15 [0] : vector<128x32xf32> to vector<32xf32>
      %23 = vector.shape_cast %22 : vector<32xf32> to vector<1x32xf32>
      %24 = arith.addf %20, %23 : vector<1x32xf32>
      %c0_16 = arith.constant 0 : index
      %c0_17 = arith.constant 0 : index
      %25 = vector.load %arg13[%c0_16, %c0_17] : memref<1x32xf32, #tpu.memory_space<vmem>>, vector<1x32xf32>
      tpu.vector_store %arg13[%c0_16, %c0_17], %24 {strides = array<i32>} : memref<1x32xf32, #tpu.memory_space<vmem>>, vector<1x32xf32>,
    } else {
    }
    %c1_i32 = arith.constant 1 : i32
    %12 = arith.cmpi sge, %arg0, %c1_i32 : i32
    %13 = arith.extui %12 : i1 to i32
    %c0_i32_7 = arith.constant 0 : i32
    %14 = arith.cmpi ne, %13, %c0_i32_7 : i32
    scf.if %14 {
      %c1_i32_8 = arith.constant 1 : i32
      %15 = arith.cmpi eq, %arg0, %c1_i32_8 : i32
      %c0_i32_9 = arith.constant 0 : i32
      %16 = arith.cmpi eq, %arg1, %c0_i32_9 : i32
      %17 = arith.andi %15, %16 : i1
      %18 = arith.extui %17 : i1 to i32
      %c0_i32_10 = arith.constant 0 : i32
      %19 = arith.cmpi ne, %18, %c0_i32_10 : i32
      scf.if %19 {
        %c0_25 = arith.constant 0 : index
        %c0_26 = arith.constant 0 : index
        %42 = vector.load %arg12[%c0_25, %c0_26] : memref<1x32xf32, #tpu.memory_space<vmem>>, vector<1x32xf32>
        %cst_27 = arith.constant 3.906250e-03 : f32
        %43 = vector.broadcast %cst_27 : f32 to vector<1x32xf32>
        %44 = arith.mulf %42, %43 : vector<1x32xf32>
        %c0_28 = arith.constant 0 : index
        %c0_29 = arith.constant 0 : index
        %45 = vector.load %arg13[%c0_28, %c0_29] : memref<1x32xf32, #tpu.memory_space<vmem>>, vector<1x32xf32>
        %cst_30 = arith.constant 3.906250e-03 : f32
        %46 = vector.broadcast %cst_30 : f32 to vector<1x32xf32>
        %47 = arith.mulf %45, %46 : vector<1x32xf32>
        %48 = arith.mulf %44, %44 : vector<1x32xf32>
        %49 = arith.subf %47, %48 : vector<1x32xf32>
        %c0_31 = arith.constant 0 : index
        %c0_32 = arith.constant 0 : index
        %50 = vector.load %arg4[%c0_31, %c0_32] : memref<1x32xf32, #tpu.memory_space<vmem>>, vector<1x32xf32>
        %cst_33 = arith.constant 9.99999974E-6 : f32
        %51 = vector.broadcast %cst_33 : f32 to vector<1x32xf32>
        %52 = arith.addf %49, %51 : vector<1x32xf32>
        %53 = math.rsqrt %52 : vector<1x32xf32>
        %54 = arith.mulf %50, %53 : vector<1x32xf32>
        %c0_34 = arith.constant 0 : index
        %c0_35 = arith.constant 0 : index
        %55 = vector.load %arg14[%c0_34, %c0_35] : memref<1x32xf32, #tpu.memory_space<vmem>>, vector<1x32xf32>
        tpu.vector_store %arg14[%c0_34, %c0_35], %54 {strides = array<i32>} : memref<1x32xf32, #tpu.memory_space<vmem>>, vector<1x32xf32>,
        %c0_36 = arith.constant 0 : index
        %c0_37 = arith.constant 0 : index
        %56 = vector.load %arg5[%c0_36, %c0_37] : memref<1x32xf32, #tpu.memory_space<vmem>>, vector<1x32xf32>
        %57 = arith.mulf %44, %54 : vector<1x32xf32>
        %58 = arith.subf %56, %57 : vector<1x32xf32>
        %c0_38 = arith.constant 0 : index
        %c0_39 = arith.constant 0 : index
        %59 = vector.load %arg15[%c0_38, %c0_39] : memref<1x32xf32, #tpu.memory_space<vmem>>, vector<1x32xf32>
        tpu.vector_store %arg15[%c0_38, %c0_39], %58 {strides = array<i32>} : memref<1x32xf32, #tpu.memory_space<vmem>>, vector<1x32xf32>,
      } else {
      }
      %c0_11 = arith.constant 0 : index
      %c0_12 = arith.constant 0 : index
      %20 = vector.load %arg14[%c0_11, %c0_12] : memref<1x32xf32, #tpu.memory_space<vmem>>, vector<1x32xf32>
      %21 = vector.broadcast %20 : vector<1x32xf32> to vector<128x32xf32>
      %22 = arith.mulf %8, %21 : vector<128x32xf32>
      %c0_13 = arith.constant 0 : index
      %c0_14 = arith.constant 0 : index
      %23 = vector.load %arg15[%c0_13, %c0_14] : memref<1x32xf32, #tpu.memory_space<vmem>>, vector<1x32xf32>
      %24 = vector.broadcast %23 : vector<1x32xf32> to vector<128x32xf32>
      %25 = arith.addf %22, %24 : vector<128x32xf32>
      %cst_15 = arith.constant 0.000000e+00 : f32
      %26 = vector.broadcast %cst_15 : f32 to vector<128x32xf32>
      %27 = arith.maximumf %25, %26 : vector<128x32xf32>
      %28 = arith.truncf %27 : vector<128x32xf32> to vector<128x32xbf16>
      %c0_16 = arith.constant 0 : index
      %c0_17 = arith.constant 0 : index
      %29 = vector.load %arg6[%c0_16, %c0_17] : memref<32x16xbf16, #tpu.memory_space<vmem>>, vector<32x16xbf16>
      %cst_18 = arith.constant dense<0.000000e+00> : vector<128x16xf32>
      %30 = tpu.matmul %28, %29, %cst_18 {dimension_numbers = #tpu.dot_dimension_numbers<[1], [0], [0], [1], [0, 0, 1, 1], [], []>} : vector<128x32xbf16>, vector<32x16xbf16>, vector<128x16xf32> -> vector<128x16xf32>
      %c1_i32_19 = arith.constant 1 : i32
      %31 = arith.cmpi eq, %arg0, %c1_i32_19 : i32
      %32 = arith.extui %31 : i1 to i32
      %c0_i32_20 = arith.constant 0 : i32
      %33 = arith.cmpi ne, %32, %c0_i32_20 : i32
      scf.if %33 {
        %c0_25 = arith.constant 0 : index
        %c0_26 = arith.constant 0 : index
        %42 = vector.load %arg16[%c0_25, %c0_26] : memref<1x16xf32, #tpu.memory_space<vmem>>, vector<1x16xf32>
        %cst_27 = arith.constant dense<0.000000e+00> : vector<16xf32>
        %43 = vector.multi_reduction <add>, %30, %cst_27 [0] : vector<128x16xf32> to vector<16xf32>
        %44 = vector.shape_cast %43 : vector<16xf32> to vector<1x16xf32>
        %45 = arith.addf %42, %44 : vector<1x16xf32>
        %c0_28 = arith.constant 0 : index
        %c0_29 = arith.constant 0 : index
        %46 = vector.load %arg16[%c0_28, %c0_29] : memref<1x16xf32, #tpu.memory_space<vmem>>, vector<1x16xf32>
        tpu.vector_store %arg16[%c0_28, %c0_29], %45 {strides = array<i32>} : memref<1x16xf32, #tpu.memory_space<vmem>>, vector<1x16xf32>,
        %c0_30 = arith.constant 0 : index
        %c0_31 = arith.constant 0 : index
        %47 = vector.load %arg17[%c0_30, %c0_31] : memref<1x16xf32, #tpu.memory_space<vmem>>, vector<1x16xf32>
        %48 = arith.mulf %30, %30 : vector<128x16xf32>
        %cst_32 = arith.constant dense<0.000000e+00> : vector<16xf32>
        %49 = vector.multi_reduction <add>, %48, %cst_32 [0] : vector<128x16xf32> to vector<16xf32>
        %50 = vector.shape_cast %49 : vector<16xf32> to vector<1x16xf32>
        %51 = arith.addf %47, %50 : vector<1x16xf32>
        %c0_33 = arith.constant 0 : index
        %c0_34 = arith.constant 0 : index
        %52 = vector.load %arg17[%c0_33, %c0_34] : memref<1x16xf32, #tpu.memory_space<vmem>>, vector<1x16xf32>
        tpu.vector_store %arg17[%c0_33, %c0_34], %51 {strides = array<i32>} : memref<1x16xf32, #tpu.memory_space<vmem>>, vector<1x16xf32>,
      } else {
      }
      %c2_i32 = arith.constant 2 : i32
      %34 = arith.cmpi eq, %arg0, %c2_i32 : i32
      %c0_i32_21 = arith.constant 0 : i32
      %35 = arith.cmpi eq, %arg1, %c0_i32_21 : i32
      %36 = arith.andi %34, %35 : i1
      %37 = arith.extui %36 : i1 to i32
      %c0_i32_22 = arith.constant 0 : i32
      %38 = arith.cmpi ne, %37, %c0_i32_22 : i32
      scf.if %38 {
        %c0_25 = arith.constant 0 : index
        %c0_26 = arith.constant 0 : index
        %42 = vector.load %arg16[%c0_25, %c0_26] : memref<1x16xf32, #tpu.memory_space<vmem>>, vector<1x16xf32>
        %cst_27 = arith.constant 3.906250e-03 : f32
        %43 = vector.broadcast %cst_27 : f32 to vector<1x16xf32>
        %44 = arith.mulf %42, %43 : vector<1x16xf32>
        %c0_28 = arith.constant 0 : index
        %c0_29 = arith.constant 0 : index
        %45 = vector.load %arg17[%c0_28, %c0_29] : memref<1x16xf32, #tpu.memory_space<vmem>>, vector<1x16xf32>
        %cst_30 = arith.constant 3.906250e-03 : f32
        %46 = vector.broadcast %cst_30 : f32 to vector<1x16xf32>
        %47 = arith.mulf %45, %46 : vector<1x16xf32>
        %48 = arith.mulf %44, %44 : vector<1x16xf32>
        %49 = arith.subf %47, %48 : vector<1x16xf32>
        %c0_31 = arith.constant 0 : index
        %c0_32 = arith.constant 0 : index
        %50 = vector.load %arg7[%c0_31, %c0_32] : memref<1x16xf32, #tpu.memory_space<vmem>>, vector<1x16xf32>
        %cst_33 = arith.constant 9.99999974E-6 : f32
        %51 = vector.broadcast %cst_33 : f32 to vector<1x16xf32>
        %52 = arith.addf %49, %51 : vector<1x16xf32>
        %53 = math.rsqrt %52 : vector<1x16xf32>
        %54 = arith.mulf %50, %53 : vector<1x16xf32>
        %c0_34 = arith.constant 0 : index
        %c0_35 = arith.constant 0 : index
        %55 = vector.load %arg18[%c0_34, %c0_35] : memref<1x16xf32, #tpu.memory_space<vmem>>, vector<1x16xf32>
        tpu.vector_store %arg18[%c0_34, %c0_35], %54 {strides = array<i32>} : memref<1x16xf32, #tpu.memory_space<vmem>>, vector<1x16xf32>,
        %c0_36 = arith.constant 0 : index
        %c0_37 = arith.constant 0 : index
        %56 = vector.load %arg8[%c0_36, %c0_37] : memref<1x16xf32, #tpu.memory_space<vmem>>, vector<1x16xf32>
        %57 = arith.mulf %44, %54 : vector<1x16xf32>
        %58 = arith.subf %56, %57 : vector<1x16xf32>
        %c0_38 = arith.constant 0 : index
        %c0_39 = arith.constant 0 : index
        %59 = vector.load %arg19[%c0_38, %c0_39] : memref<1x16xf32, #tpu.memory_space<vmem>>, vector<1x16xf32>
        tpu.vector_store %arg19[%c0_38, %c0_39], %58 {strides = array<i32>} : memref<1x16xf32, #tpu.memory_space<vmem>>, vector<1x16xf32>,
      } else {
      }
      %c2_i32_23 = arith.constant 2 : i32
      %39 = arith.cmpi eq, %arg0, %c2_i32_23 : i32
      %40 = arith.extui %39 : i1 to i32
      %c0_i32_24 = arith.constant 0 : i32
      %41 = arith.cmpi ne, %40, %c0_i32_24 : i32
      scf.if %41 {
        %c0_25 = arith.constant 0 : index
        %c0_26 = arith.constant 0 : index
        %42 = vector.load %arg18[%c0_25, %c0_26] : memref<1x16xf32, #tpu.memory_space<vmem>>, vector<1x16xf32>
        %43 = vector.broadcast %42 : vector<1x16xf32> to vector<128x16xf32>
        %44 = arith.mulf %30, %43 : vector<128x16xf32>
        %c0_27 = arith.constant 0 : index
        %c0_28 = arith.constant 0 : index
        %45 = vector.load %arg19[%c0_27, %c0_28] : memref<1x16xf32, #tpu.memory_space<vmem>>, vector<1x16xf32>
        %46 = vector.broadcast %45 : vector<1x16xf32> to vector<128x16xf32>
        %47 = arith.addf %44, %46 : vector<128x16xf32>
        %cst_29 = arith.constant 0.000000e+00 : f32
        %48 = vector.broadcast %cst_29 : f32 to vector<128x16xf32>
        %49 = arith.maximumf %47, %48 : vector<128x16xf32>
        %c0_30 = arith.constant 0 : index
        %c0_31 = arith.constant 0 : index
        %50 = vector.load %arg9[%c0_30, %c0_31] : memref<1x16xf32, #tpu.memory_space<vmem>>, vector<1x16xf32>
        %51 = vector.broadcast %50 : vector<1x16xf32> to vector<128x16xf32>
        %52 = arith.mulf %49, %51 : vector<128x16xf32>
        %cst_32 = arith.constant dense<0.000000e+00> : vector<128xf32>
        %53 = vector.multi_reduction <add>, %52, %cst_32 [1] : vector<128x16xf32> to vector<128xf32>
        %54 = vector.shape_cast %53 : vector<128xf32> to vector<128x1xf32>
        %c0_33 = arith.constant 0 : index
        %c0_34 = arith.constant 0 : index
        %55 = vector.load %arg10[%c0_33, %c0_34] : memref<1x1xf32, #tpu.memory_space<vmem>>, vector<1x1xf32>
        %56 = vector.broadcast %55 : vector<1x1xf32> to vector<128x1xf32>
        %57 = arith.addf %54, %56 : vector<128x1xf32>
        %c0_35 = arith.constant 0 : index
        %c0_36 = arith.constant 0 : index
        %58 = vector.load %arg11[%c0_35, %c0_36] : memref<128x1xf32, #tpu.memory_space<vmem>>, vector<128x1xf32>
        tpu.vector_store %arg11[%c0_35, %c0_36], %57 {strides = array<i32>} : memref<128x1xf32, #tpu.memory_space<vmem>>, vector<128x1xf32>,
      } else {
      }
    } else {
    }
    return
  }
  func.func @transform_0(%arg0: i32, %arg1: i32) -> (i32, i32) {
    %c0_i32 = arith.constant 0 : i32
    %c0_i32_0 = arith.constant 0 : i32
    return %arg1, %c0_i32 : i32, i32
  }
  func.func @transform_1(%arg0: i32, %arg1: i32) -> (i32, i32) {
    %c0_i32 = arith.constant 0 : i32
    %c0_i32_0 = arith.constant 0 : i32
    %c0_i32_1 = arith.constant 0 : i32
    return %c0_i32, %c0_i32_0 : i32, i32
  }
  func.func @transform_2(%arg0: i32, %arg1: i32) -> (i32, i32) {
    %c0_i32 = arith.constant 0 : i32
    %c0_i32_0 = arith.constant 0 : i32
    %c0_i32_1 = arith.constant 0 : i32
    return %c0_i32, %c0_i32_0 : i32, i32
  }
  func.func @transform_3(%arg0: i32, %arg1: i32) -> (i32, i32) {
    %c0_i32 = arith.constant 0 : i32
    %c0_i32_0 = arith.constant 0 : i32
    %c0_i32_1 = arith.constant 0 : i32
    return %c0_i32, %c0_i32_0 : i32, i32
  }
  func.func @transform_4(%arg0: i32, %arg1: i32) -> (i32, i32) {
    %c0_i32 = arith.constant 0 : i32
    %c0_i32_0 = arith.constant 0 : i32
    %c0_i32_1 = arith.constant 0 : i32
    return %c0_i32, %c0_i32_0 : i32, i32
  }
  func.func @transform_5(%arg0: i32, %arg1: i32) -> (i32, i32) {
    %c0_i32 = arith.constant 0 : i32
    %c0_i32_0 = arith.constant 0 : i32
    %c0_i32_1 = arith.constant 0 : i32
    return %c0_i32, %c0_i32_0 : i32, i32
  }
  func.func @transform_6(%arg0: i32, %arg1: i32) -> (i32, i32) {
    %c0_i32 = arith.constant 0 : i32
    %c0_i32_0 = arith.constant 0 : i32
    %c0_i32_1 = arith.constant 0 : i32
    return %c0_i32, %c0_i32_0 : i32, i32
  }
  func.func @transform_7(%arg0: i32, %arg1: i32) -> (i32, i32) {
    %c0_i32 = arith.constant 0 : i32
    %c0_i32_0 = arith.constant 0 : i32
    %c0_i32_1 = arith.constant 0 : i32
    return %c0_i32, %c0_i32_0 : i32, i32
  }
  func.func @transform_8(%arg0: i32, %arg1: i32) -> (i32, i32) {
    %c0_i32 = arith.constant 0 : i32
    %c0_i32_0 = arith.constant 0 : i32
    %c0_i32_1 = arith.constant 0 : i32
    return %c0_i32, %c0_i32_0 : i32, i32
  }
  func.func @transform_9(%arg0: i32, %arg1: i32) -> (i32, i32) {
    %c0_i32 = arith.constant 0 : i32
    %c0_i32_0 = arith.constant 0 : i32
    return %arg1, %c0_i32 : i32, i32
  }
}

</mosaic_0001>

<llo_original>
// kernel: tpu_custom_call.1
$region0: #{tpu_custom_call.1}
  #allocation0 [shape = 'u32[]', space=smem, size = 0x4, offset = 0x4, fixed_abs, tag = 'smem constant byte address 0x4 - core index']
  #allocation1 [shape = 'u32[144,128]{1,0:T(1,128)}', space=vmem, size = 0x12000, scoped, tag = 'internal scratch']
  #allocation2 [shape = 'f32[1,32]{1,0:T(1,128)}', space=vmem, size = 0x200, scoped, tag = 'scratch operand']
  #allocation3 [shape = 'f32[1,32]{1,0:T(1,128)}', space=vmem, size = 0x200, scoped, tag = 'scratch operand']
  #allocation4 [shape = 'f32[1,32]{1,0:T(1,128)}', space=vmem, size = 0x200, scoped, tag = 'scratch operand']
  #allocation5 [shape = 'f32[1,32]{1,0:T(1,128)}', space=vmem, size = 0x200, scoped, tag = 'scratch operand']
  #allocation6 [shape = 'f32[1,16]{1,0:T(1,128)}', space=vmem, size = 0x200, scoped, tag = 'scratch operand']
  #allocation7 [shape = 'f32[1,16]{1,0:T(1,128)}', space=vmem, size = 0x200, scoped, tag = 'scratch operand']
  #allocation8 [shape = 'f32[1,16]{1,0:T(1,128)}', space=vmem, size = 0x200, scoped, tag = 'scratch operand']
  #allocation9 [shape = 'f32[1,16]{1,0:T(1,128)}', space=vmem, size = 0x200, scoped, tag = 'scratch operand']
  #allocation10 [shape = 'f32[1,1]{1,0:T(1,128)S(1)}', space=vmem, size = 0x200, scoped, tag = 'scoped memory for tpu_custom_call.1']
  %s0 = inlined_call_operand.vmem [shape: f32[256,16], index: 0, kind: input, shape index: {}]
  %s1 = inlined_call_operand.vmem [shape: bf16[16,32], index: 1, kind: input, shape index: {}]
  %s2 = inlined_call_operand.vmem [shape: f32[1,32], index: 2, kind: input, shape index: {}]
  %s3 = inlined_call_operand.vmem [shape: f32[1,32], index: 3, kind: input, shape index: {}]
  %s4 = inlined_call_operand.vmem [shape: bf16[32,16], index: 4, kind: input, shape index: {}]
  %s5 = inlined_call_operand.vmem [shape: f32[1,16], index: 5, kind: input, shape index: {}]
  %s6 = inlined_call_operand.vmem [shape: f32[1,16], index: 6, kind: input, shape index: {}]
  %s7 = inlined_call_operand.vmem [shape: f32[1,16], index: 7, kind: input, shape index: {}]
  %s8 = inlined_call_operand.<no memory space> [shape: f32[1,1], index: 8, kind: input, shape index: {}]
  %s9 = inlined_call_operand.vmem [shape: f32[256,1], index: 9, kind: output, shape index: {}]
  %s10 = sld [smem:[#allocation0]]
  $region97: #{tpu_custom_call.1} parent=0
    _
  %s12 = ssub.s32 1, %s10
  %s13 = scalar_select 0, %s12, %s10
  %v14 = vstv %s8
  %15 = vst [vmem:[#allocation10] sm:$0x1] %v14
  loop: start=0, step=1, limit=8
  $region2: #{tpu_custom_call.1} parent=0 // loop_pre_header
    _
  $region3: #{tpu_custom_call.1} parent=0 // loop_header
    %s17 = sphi 0, %s21
    %p18 = scmp.ge.s32.totalorder %s17, 8
    %s24 = sphi 0, %s36
    %s25 = sphi 0, %s32
    %s26 = sphi 0, %s24
    %s27 = sphi 0, %s25
    %s28 = sphi 0, %s26
    %s29 = sphi 0, %s27
    %s39 = sphi 0, %s41
    %s42 = sphi 0, %s39
    %s43 = sphi 0, %s42
    %s59 = sphi 0, %s43
    %s63 = sphi 0, %s63
    %s65 = sphi 0, %s63
    %s66 = sphi 0, %s65
    %s80 = sphi 0, %s66
    %s84 = sphi 0, %s84
    %s86 = sphi 0, %s84
    %s87 = sphi 0, %s86
    %s101 = sphi 0, %s87
    %s105 = sphi 0, %s105
    %s107 = sphi 0, %s105
    %s108 = sphi 0, %s107
    %s122 = sphi 0, %s108
    %s126 = sphi 0, %s126
    %s128 = sphi 0, %s126
    %s129 = sphi 0, %s128
    %s143 = sphi 0, %s129
    %s147 = sphi 0, %s147
    %s149 = sphi 0, %s147
    %s150 = sphi 0, %s149
    %s164 = sphi 0, %s150
    %s168 = sphi 0, %s168
    %s170 = sphi 0, %s168
    %s171 = sphi 0, %s170
    %s185 = sphi 0, %s171
    %s189 = sphi 0, %s189
    %s191 = sphi 0, %s189
    %s192 = sphi 0, %s191
    %s206 = sphi 0, %s192
    %s210 = sphi 0, %s210
    %s212 = sphi 0, %s210
    %s213 = sphi 0, %s212
    %s227 = sphi 0, %s213
    %s233 = sphi 0, %s235
    %s236 = sphi 0, %s233
    %s237 = sphi 0, %s236
    %s253 = sphi 0, %s237
  $region4: #{tpu_custom_call.1} parent=0 // loop_header_branch
    %20 = sbr.rel (%p18) target = $region8
  $region5: #{tpu_custom_call.1} parent=0 // loop_body
    %s22 = ssub.s32 %s17, 1
    %s23 = ssub.s32 %s17, 2
    %s30 = sadd.s32 1, %s25
    %p31 = scmp.ge.s32.totalorder %s30, 2
    %s32 = scalar_select %p31, 0, %s30
    %s33 = sadd.s32 1, %s24
    %s34 = scalar_select %p31, %s33, %s24
    %p35 = scmp.ge.s32.totalorder %s34, 3
    %s36 = scalar_select %p35, 0, %s34
    %s37 = ssub.s32 %s25, %s32
    %p38 = scmp.eq.s32.totalorder %s37, 0
    %s40 = sadd.s32 %s39, 1
    %s41 = scalar_select %p38, %s39, %s40
    %p44 = pneg %p38
    %p45 = scmp.eq.s32.totalorder %s17, 5
    %p46 = por %p44, %p45
    %p47 = scmp.ne.s32.totalorder %s39, %s42
    %p48 = scmp.eq.s32.totalorder %s17, 0
    %p49 = por %p47, %p48
    %p50 = scmp.ne.s32.totalorder %s39, %s42
    %p51 = scmp.eq.s32.totalorder %s22, 5
    %p52 = por %p50, %p51
    %p53 = scmp.ne.s32.totalorder %s42, %s43
    %p54 = scmp.eq.s32.totalorder %s22, 0
    %p55 = por %p53, %p54
    %p56 = scmp.ne.s32.totalorder %s42, %s43
    %p57 = scmp.eq.s32.totalorder %s23, 5
    %p58 = por %p56, %p57
    %p60 = scmp.ne.s32.totalorder %s43, %s59
    %p61 = scmp.eq.s32.totalorder %s23, 0
    %p62 = por %p60, %p61
    %s64 = sadd.s32 %s63, 1
    %p67 = scmp.eq.s32.totalorder %s17, 5
    %p68 = scmp.ne.s32.totalorder %s63, %s65
    %p69 = scmp.eq.s32.totalorder %s17, 0
    %p70 = por %p68, %p69
    %p71 = scmp.ne.s32.totalorder %s63, %s65
    %p72 = scmp.eq.s32.totalorder %s22, 5
    %p73 = por %p71, %p72
    %p74 = scmp.ne.s32.totalorder %s65, %s66
    %p75 = scmp.eq.s32.totalorder %s22, 0
    %p76 = por %p74, %p75
    %p77 = scmp.ne.s32.totalorder %s65, %s66
    %p78 = scmp.eq.s32.totalorder %s23, 5
    %p79 = por %p77, %p78
    %p81 = scmp.ne.s32.totalorder %s66, %s80
    %p82 = scmp.eq.s32.totalorder %s23, 0
    %p83 = por %p81, %p82
    %s85 = sadd.s32 %s84, 1
    %p88 = scmp.eq.s32.totalorder %s17, 5
    %p89 = scmp.ne.s32.totalorder %s84, %s86
    %p90 = scmp.eq.s32.totalorder %s17, 0
    %p91 = por %p89, %p90
    %p92 = scmp.ne.s32.totalorder %s84, %s86
    %p93 = scmp.eq.s32.totalorder %s22, 5
    %p94 = por %p92, %p93
    %p95 = scmp.ne.s32.totalorder %s86, %s87
    %p96 = scmp.eq.s32.totalorder %s22, 0
    %p97 = por %p95, %p96
    %p98 = scmp.ne.s32.totalorder %s86, %s87
    %p99 = scmp.eq.s32.totalorder %s23, 5
    %p100 = por %p98, %p99
    %p102 = scmp.ne.s32.totalorder %s87, %s101
    %p103 = scmp.eq.s32.totalorder %s23, 0
    %p104 = por %p102, %p103
    %s106 = sadd.s32 %s105, 1
    %p109 = scmp.eq.s32.totalorder %s17, 5
    %p110 = scmp.ne.s32.totalorder %s105, %s107
    %p111 = scmp.eq.s32.totalorder %s17, 0
    %p112 = por %p110, %p111
    %p113 = scmp.ne.s32.totalorder %s105, %s107
    %p114 = scmp.eq.s32.totalorder %s22, 5
    %p115 = por %p113, %p114
    %p116 = scmp.ne.s32.totalorder %s107, %s108
    %p117 = scmp.eq.s32.totalorder %s22, 0
    %p118 = por %p116, %p117
    %p119 = scmp.ne.s32.totalorder %s107, %s108
    %p120 = scmp.eq.s32.totalorder %s23, 5
    %p121 = por %p119, %p120
    %p123 = scmp.ne.s32.totalorder %s108, %s122
    %p124 = scmp.eq.s32.totalorder %s23, 0
    %p125 = por %p123, %p124
    %s127 = sadd.s32 %s126, 1
    %p130 = scmp.eq.s32.totalorder %s17, 5
    %p131 = scmp.ne.s32.totalorder %s126, %s128
    %p132 = scmp.eq.s32.totalorder %s17, 0
    %p133 = por %p131, %p132
    %p134 = scmp.ne.s32.totalorder %s126, %s128
    %p135 = scmp.eq.s32.totalorder %s22, 5
    %p136 = por %p134, %p135
    %p137 = scmp.ne.s32.totalorder %s128, %s129
    %p138 = scmp.eq.s32.totalorder %s22, 0
    %p139 = por %p137, %p138
    %p140 = scmp.ne.s32.totalorder %s128, %s129
    %p141 = scmp.eq.s32.totalorder %s23, 5
    %p142 = por %p140, %p141
    %p144 = scmp.ne.s32.totalorder %s129, %s143
    %p145 = scmp.eq.s32.totalorder %s23, 0
    %p146 = por %p144, %p145
    %s148 = sadd.s32 %s147, 1
    %p151 = scmp.eq.s32.totalorder %s17, 5
    %p152 = scmp.ne.s32.totalorder %s147, %s149
    %p153 = scmp.eq.s32.totalorder %s17, 0
    %p154 = por %p152, %p153
    %p155 = scmp.ne.s32.totalorder %s147, %s149
    %p156 = scmp.eq.s32.totalorder %s22, 5
    %p157 = por %p155, %p156
    %p158 = scmp.ne.s32.totalorder %s149, %s150
    %p159 = scmp.eq.s32.totalorder %s22, 0
    %p160 = por %p158, %p159
    %p161 = scmp.ne.s32.totalorder %s149, %s150
    %p162 = scmp.eq.s32.totalorder %s23, 5
    %p163 = por %p161, %p162
    %p165 = scmp.ne.s32.totalorder %s150, %s164
    %p166 = scmp.eq.s32.totalorder %s23, 0
    %p167 = por %p165, %p166
    %s169 = sadd.s32 %s168, 1
    %p172 = scmp.eq.s32.totalorder %s17, 5
    %p173 = scmp.ne.s32.totalorder %s168, %s170
    %p174 = scmp.eq.s32.totalorder %s17, 0
    %p175 = por %p173, %p174
    %p176 = scmp.ne.s32.totalorder %s168, %s170
    %p177 = scmp.eq.s32.totalorder %s22, 5
    %p178 = por %p176, %p177
    %p179 = scmp.ne.s32.totalorder %s170, %s171
    %p180 = scmp.eq.s32.totalorder %s22, 0
    %p181 = por %p179, %p180
    %p182 = scmp.ne.s32.totalorder %s170, %s171
    %p183 = scmp.eq.s32.totalorder %s23, 5
    %p184 = por %p182, %p183
    %p186 = scmp.ne.s32.totalorder %s171, %s185
    %p187 = scmp.eq.s32.totalorder %s23, 0
    %p188 = por %p186, %p187
    %s190 = sadd.s32 %s189, 1
    %p193 = scmp.eq.s32.totalorder %s17, 5
    %p194 = scmp.ne.s32.totalorder %s189, %s191
    %p195 = scmp.eq.s32.totalorder %s17, 0
    %p196 = por %p194, %p195
    %p197 = scmp.ne.s32.totalorder %s189, %s191
    %p198 = scmp.eq.s32.totalorder %s22, 5
    %p199 = por %p197, %p198
    %p200 = scmp.ne.s32.totalorder %s191, %s192
    %p201 = scmp.eq.s32.totalorder %s22, 0
    %p202 = por %p200, %p201
    %p203 = scmp.ne.s32.totalorder %s191, %s192
    %p204 = scmp.eq.s32.totalorder %s23, 5
    %p205 = por %p203, %p204
    %p207 = scmp.ne.s32.totalorder %s192, %s206
    %p208 = scmp.eq.s32.totalorder %s23, 0
    %p209 = por %p207, %p208
    %s211 = sadd.s32 %s210, 1
    %p214 = scmp.eq.s32.totalorder %s17, 5
    %p215 = scmp.ne.s32.totalorder %s210, %s212
    %p216 = scmp.eq.s32.totalorder %s17, 0
    %p217 = por %p215, %p216
    %p218 = scmp.ne.s32.totalorder %s210, %s212
    %p219 = scmp.eq.s32.totalorder %s22, 5
    %p220 = por %p218, %p219
    %p221 = scmp.ne.s32.totalorder %s212, %s213
    %p222 = scmp.eq.s32.totalorder %s22, 0
    %p223 = por %p221, %p222
    %p224 = scmp.ne.s32.totalorder %s212, %s213
    %p225 = scmp.eq.s32.totalorder %s23, 5
    %p226 = por %p224, %p225
    %p228 = scmp.ne.s32.totalorder %s213, %s227
    %p229 = scmp.eq.s32.totalorder %s23, 0
    %p230 = por %p228, %p229
    %s231 = ssub.s32 %s25, %s32
    %p232 = scmp.eq.s32.totalorder %s231, 0
    %s234 = sadd.s32 %s233, 1
    %s235 = scalar_select %p232, %s233, %s234
    %p238 = pneg %p232
    %p239 = scmp.eq.s32.totalorder %s17, 5
    %p240 = por %p238, %p239
    %p241 = scmp.ne.s32.totalorder %s233, %s236
    %p242 = scmp.eq.s32.totalorder %s17, 0
    %p243 = por %p241, %p242
    %p244 = scmp.ne.s32.totalorder %s233, %s236
    %p245 = scmp.eq.s32.totalorder %s22, 5
    %p246 = por %p244, %p245
    %p247 = scmp.ne.s32.totalorder %s236, %s237
    %p248 = scmp.eq.s32.totalorder %s22, 0
    %p249 = por %p247, %p248
    %p250 = scmp.ne.s32.totalorder %s236, %s237
    %p251 = scmp.eq.s32.totalorder %s23, 5
    %p252 = por %p250, %p251
    %p254 = scmp.ne.s32.totalorder %s237, %s253
    %p255 = scmp.eq.s32.totalorder %s23, 0
    %p256 = por %p254, %p255
    %p257 = scmp.le.s32.totalorder 1, %s17
    %p258 = scmp.lt.s32.totalorder %s17, 7
    %p259 = pnand %p257, %p258
    %p260 = pneg %p259
    // Predicated region
    $region9: #{tpu_custom_call.1} parent=5 // pred_check
      _
    $region10: #{tpu_custom_call.1} parent=5 // pred_check_branch
      %262 = sbr.rel (%p259) target = $region12
    $region11: #{tpu_custom_call.1} parent=5 // pred_region
      %s263 = ssub.s32 %s17, 1
      // Predicated region
      $region13: #{tpu_custom_call.1} parent=11 // pred_check
        %p264 = pneg %p76
      $region14: #{tpu_custom_call.1} parent=11 // pred_check_branch
        %266 = sbr.rel (%p264) target = $region16
      $region15: #{tpu_custom_call.1} parent=11 // pred_region
        _
      $region16: #{tpu_custom_call.1} parent=11 // pred_fallthru
        _
      // Predicated region
      $region17: #{tpu_custom_call.1} parent=11 // pred_check
        %p267 = pneg %p97
      $region18: #{tpu_custom_call.1} parent=11 // pred_check_branch
        %269 = sbr.rel (%p267) target = $region20
      $region19: #{tpu_custom_call.1} parent=11 // pred_region
        _
      $region20: #{tpu_custom_call.1} parent=11 // pred_fallthru
        _
      // Predicated region
      $region21: #{tpu_custom_call.1} parent=11 // pred_check
        %p270 = pneg %p118
      $region22: #{tpu_custom_call.1} parent=11 // pred_check_branch
        %272 = sbr.rel (%p270) target = $region24
      $region23: #{tpu_custom_call.1} parent=11 // pred_region
        _
      $region24: #{tpu_custom_call.1} parent=11 // pred_fallthru
        _
      // Predicated region
      $region25: #{tpu_custom_call.1} parent=11 // pred_check
        %p273 = pneg %p139
      $region26: #{tpu_custom_call.1} parent=11 // pred_check_branch
        %275 = sbr.rel (%p273) target = $region28
      $region27: #{tpu_custom_call.1} parent=11 // pred_region
        _
      $region28: #{tpu_custom_call.1} parent=11 // pred_fallthru
        _
      // Predicated region
      $region29: #{tpu_custom_call.1} parent=11 // pred_check
        %p276 = pneg %p160
      $region30: #{tpu_custom_call.1} parent=11 // pred_check_branch
        %278 = sbr.rel (%p276) target = $region32
      $region31: #{tpu_custom_call.1} parent=11 // pred_region
        _
      $region32: #{tpu_custom_call.1} parent=11 // pred_fallthru
        _
      // Predicated region
      $region33: #{tpu_custom_call.1} parent=11 // pred_check
        %p279 = pneg %p181
      $region34: #{tpu_custom_call.1} parent=11 // pred_check_branch
        %281 = sbr.rel (%p279) target = $region36
      $region35: #{tpu_custom_call.1} parent=11 // pred_region
        _
      $region36: #{tpu_custom_call.1} parent=11 // pred_fallthru
        _
      // Predicated region
      $region37: #{tpu_custom_call.1} parent=11 // pred_check
        %p282 = pneg %p202
      $region38: #{tpu_custom_call.1} parent=11 // pred_check_branch
        %284 = sbr.rel (%p282) target = $region40
      $region39: #{tpu_custom_call.1} parent=11 // pred_region
        _
      $region40: #{tpu_custom_call.1} parent=11 // pred_fallthru
        _
      // Predicated region
      $region41: #{tpu_custom_call.1} parent=11 // pred_check
        %p285 = pneg %p223
      $region42: #{tpu_custom_call.1} parent=11 // pred_check_branch
        %287 = sbr.rel (%p285) target = $region44
      $region43: #{tpu_custom_call.1} parent=11 // pred_region
        _
      $region44: #{tpu_custom_call.1} parent=11 // pred_fallthru
        _
    $region12: #{tpu_custom_call.1} parent=5 // pred_fallthru
      _
    %p288 = scmp.lt.s32.totalorder %s17, 6
    // Predicated region
    $region45: #{tpu_custom_call.1} parent=5 // pred_check
      %p289 = pneg %p288
    $region46: #{tpu_custom_call.1} parent=5 // pred_check_branch
      %291 = sbr.rel (%p289) target = $region48
    $region47: #{tpu_custom_call.1} parent=5 // pred_region
      // Predicated region
      $region49: #{tpu_custom_call.1} parent=47 // pred_check
        %p292 = pneg %p49
      $region50: #{tpu_custom_call.1} parent=47 // pred_check_branch
        %294 = sbr.rel (%p292) target = $region52
      $region51: #{tpu_custom_call.1} parent=47 // pred_region
        %s295 = smul.u32 16, %s25
        %p296 = scmp.lt.s32.totalorder %s295, 31
        %s297 = scalar_select %p296, %s295, 31
        %s298 = smul.addr %s297, 8
        %s299 = scalar_lea.vmem %s0, %s298
        %s300 = smul.u32 16, %s25
      $region52: #{tpu_custom_call.1} parent=47 // pred_fallthru
        _
    $region48: #{tpu_custom_call.1} parent=5 // pred_fallthru
      _
    %p301 = scmp.le.s32.totalorder 1, %s17
    %p302 = scmp.lt.s32.totalorder %s17, 7
    %p303 = pnand %p301, %p302
    %p304 = pneg %p303
    // Predicated region
    $region53: #{tpu_custom_call.1} parent=5 // pred_check
      _
    $region54: #{tpu_custom_call.1} parent=5 // pred_check_branch
      %306 = sbr.rel (%p303) target = $region56
    $region55: #{tpu_custom_call.1} parent=5 // pred_region
      %s307 = ssub.s32 %s17, 1
      %s308 = smul.u32 16, %s27
      %p309 = scmp.lt.s32.totalorder %s308, 31
      %s310 = scalar_select %p309, %s308, 31
      %s311 = smul.addr %s310, 8
      %s312 = scalar_lea.vmem %s0, %s311
      %p313 = pneg %p55
      %p314 = pneg %p52
      %p315 = pneg %p76
      %p316 = pneg %p73
      %p317 = pneg %p97
      %p318 = pneg %p94
      %p319 = pneg %p118
      %p320 = pneg %p115
      %p321 = pneg %p139
      %p322 = pneg %p136
      %p323 = pneg %p160
      %p324 = pneg %p157
      %p325 = pneg %p181
      %p326 = pneg %p178
      %p327 = pneg %p202
      %p328 = pneg %p199
      %p329 = pneg %p223
      %p330 = pneg %p220
      %p331 = pneg %p249
      %p332 = pneg %p246
      %s333 = smul.u32 16, %s27
      %p334 = scmp.lt.s32.totalorder %s333, 31
      %s335 = scalar_select %p334, %s333, 31
      %s336 = smul.addr %s335, 8
      %s337 = scalar_lea.vmem %s9, %s336
      %s338 = smul.u32 16, %s27
      %p339 = scmp.lt.s32.totalorder %s338, 31
      %s340 = scalar_select %p339, %s338, 31
      %s341 = smul.addr %s340, 8
      %s342 = scalar_lea.vmem %s0, %s341
      %s343 = smul.u32 16, %s27
      %s344 = smul.u32 16, %s27
      %p345 = scmp.lt.s32.totalorder %s344, 31
      %s346 = scalar_select %p345, %s344, 31
      %s347 = smul.addr %s346, 8
      %s348 = scalar_lea.vmem %s9, %s347
      %s349 = smul.u32 16, %s27
      %p351 = scmp.eq.s32.totalorder %s26, 0
      %p352 = scmp.eq.s32.totalorder %s27, 0
      %p353 = pnand %p351, %p352
      %p354 = pneg %p353
      // Predicated region
      $region57: #{tpu_custom_call.1} parent=55 // pred_check
        _
      $region58: #{tpu_custom_call.1} parent=55 // pred_check_branch
        %356 = sbr.rel (%p353) target = $region60
      $region59: #{tpu_custom_call.1} parent=55 // pred_region
        %vm357 = vcmask 253952
        %358 = vst.msk [vmem:[#allocation2] sm:$0x1] %vm357, 0.0
        %359 = vst.msk [vmem:[#allocation3] sm:$0x1] %vm357, 0.0
        %vm360 = vcmask 122880
        %361 = vst.msk [vmem:[#allocation6] sm:$0x1] %vm360, 0.0
        %362 = vst.msk [vmem:[#allocation7] sm:$0x1] %vm360, 0.0
      $region60: #{tpu_custom_call.1} parent=55 // pred_fallthru
        _
      %v363 = vld [vmem:[%s342] sm:$0xff]
      %v364 = vld [vmem:[%s342 + $0x8] sm:$0xff]
      %v365 = vld [vmem:[%s342 + $0x10] sm:$0xff]
      %v366 = vld [vmem:[%s342 + $0x18] sm:$0xff]
      %v367 = vld [vmem:[%s342 + $0x20] sm:$0xff]
      %v368 = vld [vmem:[%s342 + $0x28] sm:$0xff]
      %v369 = vld [vmem:[%s342 + $0x30] sm:$0xff]
      %v370 = vld [vmem:[%s342 + $0x38] sm:$0xff]
      %v371 = vld [vmem:[%s342 + $0x40] sm:$0xff]
      %v372 = vld [vmem:[%s342 + $0x48] sm:$0xff]
      %v373 = vld [vmem:[%s342 + $0x50] sm:$0xff]
      %v374 = vld [vmem:[%s342 + $0x58] sm:$0xff]
      %v375 = vld [vmem:[%s342 + $0x60] sm:$0xff]
      %v376 = vld [vmem:[%s342 + $0x68] sm:$0xff]
      %v377 = vld [vmem:[%s342 + $0x70] sm:$0xff]
      %v378 = vld [vmem:[%s342 + $0x78] sm:$0xff]
      %v379 = vpack.c.bf16 %v364, %v363
      %v380 = vpack.c.bf16 %v366, %v365
      %v381 = vpack.c.bf16 %v368, %v367
      %v382 = vpack.c.bf16 %v370, %v369
      %v383 = vpack.c.bf16 %v372, %v371
      %v384 = vpack.c.bf16 %v374, %v373
      %v385 = vpack.c.bf16 %v376, %v375
      %v386 = vpack.c.bf16 %v378, %v377
      %v387 = vld [vmem:[%s1] sm:$0xf]
      %v388 = vld [vmem:[%s1 + $0x4] sm:$0xf]
      %v391 = vunpack.c.l.b16 %v387
      %v392 = vunpack.c.l.b16 %v388
      %v393 = vpack.c.b16 %v392, %v391
      %vm395 = vcmask 130048
      %v397 = vsel %vm395, %v379, 0
      %v400 = vsel %vm395, %v380, 0
      %v403 = vsel %vm395, %v381, 0
      %v406 = vsel %vm395, %v382, 0
      %v409 = vsel %vm395, %v383, 0
      %v412 = vsel %vm395, %v384, 0
      %v415 = vsel %vm395, %v385, 0
      %v418 = vsel %vm395, %v386, 0
      %420 = vmatprep.subr.bf16.mxu0 0
      %421 = vmatpush1.bf16.msra.mxu0 %v393
      %422 = vmatprep.subr.bf16.mxu0 0
      %423 = vmatpush1.bf16.msra.mxu0 0
      %424 = vmatprep.subr.bf16.mxu0 0
      %425 = vmatpush1.bf16.msra.mxu0 0
      %426 = vmatprep.subr.bf16.mxu0 0
      %427 = vmatpush1.bf16.msra.mxu0 0
      %428 = vmatprep.subr.bf16.mxu0 0
      %429 = vmatpush1.bf16.msra.mxu0 0
      %430 = vmatprep.subr.bf16.mxu0 0
      %431 = vmatpush1.bf16.msra.mxu0 0
      %432 = vmatprep.subr.bf16.mxu0 0
      %433 = vmatpush1.bf16.msra.mxu0 0
      %434 = vmatprep.subr.bf16.mxu0 0
      %435 = vmatpush1.bf16.msra.mxu0 0
      %436 = vmatprep.subr.bf16.mxu0 0
      %437 = vmatpush1.bf16.msra.mxu0 0
      %438 = vmatprep.subr.bf16.mxu0 0
      %439 = vmatpush1.bf16.msra.mxu0 0
      %440 = vmatprep.subr.bf16.mxu0 0
      %441 = vmatpush1.bf16.msra.mxu0 0
      %442 = vmatprep.subr.bf16.mxu0 0
      %443 = vmatpush1.bf16.msra.mxu0 0
      %444 = vmatprep.subr.bf16.mxu0 0
      %445 = vmatpush1.bf16.msra.mxu0 0
      %446 = vmatprep.subr.bf16.mxu0 0
      %447 = vmatpush1.bf16.msra.mxu0 0
      %448 = vmatprep.subr.bf16.mxu0 0
      %449 = vmatpush1.bf16.msra.mxu0 0
      %450 = vmatprep.subr.bf16.mxu0 0
      %451 = vmatpush1.bf16.msra.mxu0 0
      %452 = vmatprep.mubr.bf16.mxu0 0
      %453 = vmatmul.mubr.bf16.gmra.mrb[0].mxu0 %v397
      %v454 = vpop.f32.mrb[0].mxu0
      %v455 = vadd.f32 0.0, %v454
      %v456 = vpop.f32.mrb[0].mxu0
      %v457 = vpop.f32.mrb[0].mxu0
      %v458 = vadd.f32 0.0, %v457
      %v459 = vpop.f32.mrb[0].mxu0
      %460 = vmatprep.mubr.bf16.mxu0 0
      %461 = vmatmul.mubr.bf16.gmra.mrb[0].mxu0 %v400
      %v462 = vpop.f32.mrb[0].mxu0
      %v463 = vadd.f32 0.0, %v462
      %v464 = vpop.f32.mrb[0].mxu0
      %v465 = vpop.f32.mrb[0].mxu0
      %v466 = vadd.f32 0.0, %v465
      %v467 = vpop.f32.mrb[0].mxu0
      %468 = vmatprep.mubr.bf16.mxu0 0
      %469 = vmatmul.mubr.bf16.gmra.mrb[0].mxu0 %v403
      %v470 = vpop.f32.mrb[0].mxu0
      %v471 = vadd.f32 0.0, %v470
      %v472 = vpop.f32.mrb[0].mxu0
      %v473 = vpop.f32.mrb[0].mxu0
      %v474 = vadd.f32 0.0, %v473
      %v475 = vpop.f32.mrb[0].mxu0
      %476 = vmatprep.mubr.bf16.mxu0 0
      %477 = vmatmul.mubr.bf16.gmra.mrb[0].mxu0 %v406
      %v478 = vpop.f32.mrb[0].mxu0
      %v479 = vadd.f32 0.0, %v478
      %v480 = vpop.f32.mrb[0].mxu0
      %v481 = vpop.f32.mrb[0].mxu0
      %v482 = vadd.f32 0.0, %v481
      %v483 = vpop.f32.mrb[0].mxu0
      %484 = vmatprep.mubr.bf16.mxu0 0
      %485 = vmatmul.mubr.bf16.gmra.mrb[0].mxu0 %v409
      %v486 = vpop.f32.mrb[0].mxu0
      %v487 = vadd.f32 0.0, %v486
      %v488 = vpop.f32.mrb[0].mxu0
      %v489 = vpop.f32.mrb[0].mxu0
      %v490 = vadd.f32 0.0, %v489
      %v491 = vpop.f32.mrb[0].mxu0
      %492 = vmatprep.mubr.bf16.mxu0 0
      %493 = vmatmul.mubr.bf16.gmra.mrb[0].mxu0 %v412
      %v494 = vpop.f32.mrb[0].mxu0
      %v495 = vadd.f32 0.0, %v494
      %v496 = vpop.f32.mrb[0].mxu0
      %v497 = vpop.f32.mrb[0].mxu0
      %v498 = vadd.f32 0.0, %v497
      %v499 = vpop.f32.mrb[0].mxu0
      %500 = vmatprep.mubr.bf16.mxu0 0
      %501 = vmatmul.mubr.bf16.gmra.mrb[0].mxu0 %v415
      %v502 = vpop.f32.mrb[0].mxu0
      %v503 = vadd.f32 0.0, %v502
      %v504 = vpop.f32.mrb[0].mxu0
      %v505 = vpop.f32.mrb[0].mxu0
      %v506 = vadd.f32 0.0, %v505
      %v507 = vpop.f32.mrb[0].mxu0
      %508 = vmatprep.mubr.bf16.mxu0 0
      %509 = vmatmul.mubr.bf16.gmra.mrb[0].mxu0 %v418
      %v510 = vpop.f32.mrb[0].mxu0
      %v511 = vadd.f32 0.0, %v510
      %v512 = vpop.f32.mrb[0].mxu0
      %v513 = vpop.f32.mrb[0].mxu0
      %v514 = vadd.f32 0.0, %v513
      %v515 = vpop.f32.mrb[0].mxu0
      %516 = vdwg.mxu0
      // Predicated region
      $region61: #{tpu_custom_call.1} parent=55 // pred_check
        %p517 = pneg %p351
      $region62: #{tpu_custom_call.1} parent=55 // pred_check_branch
        %519 = sbr.rel (%p517) target = $region64
      $region63: #{tpu_custom_call.1} parent=55 // pred_region
        %v520 = vld [vmem:[#allocation2] sm:$0x1]
        %vm521 = vcmask 261120
        %v522 = vsel %vm521, %v455, 0.0
        %v523 = vsel %vm521, %v458, 0.0
        %v524 = vadd.f32 %v522, %v523
        %v525 = vsel %vm521, %v463, 0.0
        %v526 = vadd.f32 %v524, %v525
        %v527 = vsel %vm521, %v466, 0.0
        %v528 = vadd.f32 %v526, %v527
        %v529 = vsel %vm521, %v471, 0.0
        %v530 = vadd.f32 %v528, %v529
        %v531 = vsel %vm521, %v474, 0.0
        %v532 = vadd.f32 %v530, %v531
        %v533 = vsel %vm521, %v479, 0.0
        %v534 = vadd.f32 %v532, %v533
        %v535 = vsel %vm521, %v482, 0.0
        %v536 = vadd.f32 %v534, %v535
        %v537 = vsel %vm521, %v487, 0.0
        %v538 = vadd.f32 %v536, %v537
        %v539 = vsel %vm521, %v490, 0.0
        %v540 = vadd.f32 %v538, %v539
        %v541 = vsel %vm521, %v495, 0.0
        %v542 = vadd.f32 %v540, %v541
        %v543 = vsel %vm521, %v498, 0.0
        %v544 = vadd.f32 %v542, %v543
        %v545 = vsel %vm521, %v503, 0.0
        %v546 = vadd.f32 %v544, %v545
        %v547 = vsel %vm521, %v506, 0.0
        %v548 = vadd.f32 %v546, %v547
        %v549 = vsel %vm521, %v511, 0.0
        %v550 = vadd.f32 %v548, %v549
        %v551 = vsel %vm521, %v514, 0.0
        %v552 = vadd.f32 %v550, %v551
        %v553 = vrot.slane %v552, 4
        %v554 = vadd.f32 %v552, %v553
        %v555 = vrot.slane %v554, 2
        %v556 = vadd.f32 %v554, %v555
        %v557 = vrot.slane %v556, 1
        %v558 = vadd.f32 %v556, %v557
        %v559 = vadd.f32 %v520, %v558
        %vm560 = vcmask 253952
        %561 = vst.msk [vmem:[#allocation2] sm:$0x1] %vm560, %v559
        %v562 = vld [vmem:[#allocation3] sm:$0x1]
        %v563 = vmul.f32 %v455, %v455
        %v564 = vmul.f32 %v458, %v458
        %v565 = vmul.f32 %v463, %v463
        %v566 = vmul.f32 %v466, %v466
        %v567 = vmul.f32 %v471, %v471
        %v568 = vmul.f32 %v474, %v474
        %v569 = vmul.f32 %v479, %v479
        %v570 = vmul.f32 %v482, %v482
        %v571 = vmul.f32 %v487, %v487
        %v572 = vmul.f32 %v490, %v490
        %v573 = vmul.f32 %v495, %v495
        %v574 = vmul.f32 %v498, %v498
        %v575 = vmul.f32 %v503, %v503
        %v576 = vmul.f32 %v506, %v506
        %v577 = vmul.f32 %v511, %v511
        %v578 = vmul.f32 %v514, %v514
        %v579 = vsel %vm521, %v563, 0.0
        %v580 = vsel %vm521, %v564, 0.0
        %v581 = vadd.f32 %v579, %v580
        %v582 = vsel %vm521, %v565, 0.0
        %v583 = vadd.f32 %v581, %v582
        %v584 = vsel %vm521, %v566, 0.0
        %v585 = vadd.f32 %v583, %v584
        %v586 = vsel %vm521, %v567, 0.0
        %v587 = vadd.f32 %v585, %v586
        %v588 = vsel %vm521, %v568, 0.0
        %v589 = vadd.f32 %v587, %v588
        %v590 = vsel %vm521, %v569, 0.0
        %v591 = vadd.f32 %v589, %v590
        %v592 = vsel %vm521, %v570, 0.0
        %v593 = vadd.f32 %v591, %v592
        %v594 = vsel %vm521, %v571, 0.0
        %v595 = vadd.f32 %v593, %v594
        %v596 = vsel %vm521, %v572, 0.0
        %v597 = vadd.f32 %v595, %v596
        %v598 = vsel %vm521, %v573, 0.0
        %v599 = vadd.f32 %v597, %v598
        %v600 = vsel %vm521, %v574, 0.0
        %v601 = vadd.f32 %v599, %v600
        %v602 = vsel %vm521, %v575, 0.0
        %v603 = vadd.f32 %v601, %v602
        %v604 = vsel %vm521, %v576, 0.0
        %v605 = vadd.f32 %v603, %v604
        %v606 = vsel %vm521, %v577, 0.0
        %v607 = vadd.f32 %v605, %v606
        %v608 = vsel %vm521, %v578, 0.0
        %v609 = vadd.f32 %v607, %v608
        %v610 = vrot.slane %v609, 4
        %v611 = vadd.f32 %v609, %v610
        %v612 = vrot.slane %v611, 2
        %v613 = vadd.f32 %v611, %v612
        %v614 = vrot.slane %v613, 1
        %v615 = vadd.f32 %v613, %v614
        %v616 = vadd.f32 %v562, %v615
        %617 = vst.msk [vmem:[#allocation3] sm:$0x1] %vm560, %v616
      $region64: #{tpu_custom_call.1} parent=55 // pred_fallthru
        _
      %p618 = scmp.ge.s32.totalorder %s26, 1
      // Predicated region
      $region65: #{tpu_custom_call.1} parent=55 // pred_check
        %p619 = pneg %p618
      $region66: #{tpu_custom_call.1} parent=55 // pred_check_branch
        %621 = sbr.rel (%p619) target = $region68
      $region67: #{tpu_custom_call.1} parent=55 // pred_region
        %p622 = scmp.eq.s32.totalorder %s26, 1
        %p623 = pnand %p622, %p352
        %p624 = pneg %p623
        // Predicated region
        $region69: #{tpu_custom_call.1} parent=67 // pred_check
          _
        $region70: #{tpu_custom_call.1} parent=67 // pred_check_branch
          %626 = sbr.rel (%p623) target = $region72
        $region71: #{tpu_custom_call.1} parent=67 // pred_region
          %v627 = vld [vmem:[#allocation2] sm:$0x1]
          %v628 = vmul.f32 %v627, 0.00390625
          %v629 = vld [vmem:[#allocation3] sm:$0x1]
          %v630 = vmul.f32 %v629, 0.00390625
          %v631 = vmul.f32 %v628, %v628
          %v632 = vsub.f32 %v630, %v631
          %v633 = vld [vmem:[%s2] sm:$0x1]
          %v634 = vadd.f32 %v632, 1e-05
          %v635 = vrsqrt.pop %v634
          %v636 = vmul.f32 %v633, %v635
          %vm637 = vcmask 253952
          %638 = vst.msk [vmem:[#allocation4] sm:$0x1] %vm637, %v636
          %v639 = vld [vmem:[%s3] sm:$0x1]
          %v640 = vmul.f32 %v628, %v636
          %v641 = vsub.f32 %v639, %v640
          %642 = vst.msk [vmem:[#allocation5] sm:$0x1] %vm637, %v641
        $region72: #{tpu_custom_call.1} parent=67 // pred_fallthru
          _
        %v643 = vld [vmem:[#allocation4] sm:$0x1]
        %v645 = vlaneseq
        %v646 = vshrl.u32 %v645, 7
        %v647 = vsub.s32 0, %v646
        %v648 = vrot.slane %v643, %v647
        %v650 = vmul.f32 %v455, %v648
        %v651 = vmul.f32 %v458, %v648
        %v652 = vmul.f32 %v463, %v648
        %v653 = vmul.f32 %v466, %v648
        %v654 = vmul.f32 %v471, %v648
        %v655 = vmul.f32 %v474, %v648
        %v656 = vmul.f32 %v479, %v648
        %v657 = vmul.f32 %v482, %v648
        %v658 = vmul.f32 %v487, %v648
        %v659 = vmul.f32 %v490, %v648
        %v660 = vmul.f32 %v495, %v648
        %v661 = vmul.f32 %v498, %v648
        %v662 = vmul.f32 %v503, %v648
        %v663 = vmul.f32 %v506, %v648
        %v664 = vmul.f32 %v511, %v648
        %v665 = vmul.f32 %v514, %v648
        %v666 = vld [vmem:[#allocation5] sm:$0x1]
        %v668 = vlaneseq
        %v669 = vshrl.u32 %v668, 7
        %v670 = vsub.s32 0, %v669
        %v671 = vrot.slane %v666, %v670
        %v673 = vadd.f32 %v650, %v671
        %v674 = vadd.f32 %v651, %v671
        %v675 = vadd.f32 %v652, %v671
        %v676 = vadd.f32 %v653, %v671
        %v677 = vadd.f32 %v654, %v671
        %v678 = vadd.f32 %v655, %v671
        %v679 = vadd.f32 %v656, %v671
        %v680 = vadd.f32 %v657, %v671
        %v681 = vadd.f32 %v658, %v671
        %v682 = vadd.f32 %v659, %v671
        %v683 = vadd.f32 %v660, %v671
        %v684 = vadd.f32 %v661, %v671
        %v685 = vadd.f32 %v662, %v671
        %v686 = vadd.f32 %v663, %v671
        %v687 = vadd.f32 %v664, %v671
        %v688 = vadd.f32 %v665, %v671
        %v689 = vmax.f32 %v673, 0.0
        %v690 = vmax.f32 %v674, 0.0
        %v691 = vmax.f32 %v675, 0.0
        %v692 = vmax.f32 %v676, 0.0
        %v693 = vmax.f32 %v677, 0.0
        %v694 = vmax.f32 %v678, 0.0
        %v695 = vmax.f32 %v679, 0.0
        %v696 = vmax.f32 %v680, 0.0
        %v697 = vmax.f32 %v681, 0.0
        %v698 = vmax.f32 %v682, 0.0
        %v699 = vmax.f32 %v683, 0.0
        %v700 = vmax.f32 %v684, 0.0
        %v701 = vmax.f32 %v685, 0.0
        %v702 = vmax.f32 %v686, 0.0
        %v703 = vmax.f32 %v687, 0.0
        %v704 = vmax.f32 %v688, 0.0
        %v705 = vpack.c.bf16 %v690, %v689
        %v706 = vpack.c.bf16 %v692, %v691
        %v707 = vpack.c.bf16 %v694, %v693
        %v708 = vpack.c.bf16 %v696, %v695
        %v709 = vpack.c.bf16 %v698, %v697
        %v710 = vpack.c.bf16 %v700, %v699
        %v711 = vpack.c.bf16 %v702, %v701
        %v712 = vpack.c.bf16 %v704, %v703
        %v713 = vld [vmem:[%s4] sm:$0xf]
        %v714 = vld [vmem:[%s4 + $0x4] sm:$0xf]
        %v715 = vld [vmem:[%s4 + $0x8] sm:$0xf]
        %v716 = vld [vmem:[%s4 + $0xc] sm:$0xf]
        %v721 = vunpack.c.l.b16 %v713
        %v722 = vunpack.c.l.b16 %v714
        %v723 = vunpack.c.l.b16 %v715
        %v724 = vunpack.c.l.b16 %v716
        %v725 = vpack.c.b16 %v722, %v721
        %v726 = vpack.c.b16 %v724, %v723
        %vm729 = vcmask 261120
        %v731 = vsel %vm729, %v705, 0
        %v734 = vsel %vm729, %v706, 0
        %v737 = vsel %vm729, %v707, 0
        %v740 = vsel %vm729, %v708, 0
        %v743 = vsel %vm729, %v709, 0
        %v746 = vsel %vm729, %v710, 0
        %v749 = vsel %vm729, %v711, 0
        %v752 = vsel %vm729, %v712, 0
        %754 = vmatprep.subr.bf16.mxu0 0
        %755 = vmatpush1.bf16.msra.mxu0 %v725
        %756 = vmatprep.subr.bf16.mxu0 0
        %757 = vmatpush1.bf16.msra.mxu0 %v726
        %758 = vmatprep.subr.bf16.mxu0 0
        %759 = vmatpush1.bf16.msra.mxu0 0
        %760 = vmatprep.subr.bf16.mxu0 0
        %761 = vmatpush1.bf16.msra.mxu0 0
        %762 = vmatprep.subr.bf16.mxu0 0
        %763 = vmatpush1.bf16.msra.mxu0 0
        %764 = vmatprep.subr.bf16.mxu0 0
        %765 = vmatpush1.bf16.msra.mxu0 0
        %766 = vmatprep.subr.bf16.mxu0 0
        %767 = vmatpush1.bf16.msra.mxu0 0
        %768 = vmatprep.subr.bf16.mxu0 0
        %769 = vmatpush1.bf16.msra.mxu0 0
        %770 = vmatprep.subr.bf16.mxu0 0
        %771 = vmatpush1.bf16.msra.mxu0 0
        %772 = vmatprep.subr.bf16.mxu0 0
        %773 = vmatpush1.bf16.msra.mxu0 0
        %774 = vmatprep.subr.bf16.mxu0 0
        %775 = vmatpush1.bf16.msra.mxu0 0
        %776 = vmatprep.subr.bf16.mxu0 0
        %777 = vmatpush1.bf16.msra.mxu0 0
        %778 = vmatprep.subr.bf16.mxu0 0
        %779 = vmatpush1.bf16.msra.mxu0 0
        %780 = vmatprep.subr.bf16.mxu0 0
        %781 = vmatpush1.bf16.msra.mxu0 0
        %782 = vmatprep.subr.bf16.mxu0 0
        %783 = vmatpush1.bf16.msra.mxu0 0
        %784 = vmatprep.subr.bf16.mxu0 0
        %785 = vmatpush1.bf16.msra.mxu0 0
        %786 = vmatprep.mubr.bf16.mxu0 0
        %787 = vmatmul.mubr.bf16.gmra.mrb[0].mxu0 %v731
        %v788 = vpop.f32.mrb[0].mxu0
        %v789 = vadd.f32 0.0, %v788
        %v790 = vpop.f32.mrb[0].mxu0
        %v791 = vpop.f32.mrb[0].mxu0
        %v792 = vadd.f32 0.0, %v791
        %v793 = vpop.f32.mrb[0].mxu0
        %794 = vmatprep.mubr.bf16.mxu0 0
        %795 = vmatmul.mubr.bf16.gmra.mrb[0].mxu0 %v734
        %v796 = vpop.f32.mrb[0].mxu0
        %v797 = vadd.f32 0.0, %v796
        %v798 = vpop.f32.mrb[0].mxu0
        %v799 = vpop.f32.mrb[0].mxu0
        %v800 = vadd.f32 0.0, %v799
        %v801 = vpop.f32.mrb[0].mxu0
        %802 = vmatprep.mubr.bf16.mxu0 0
        %803 = vmatmul.mubr.bf16.gmra.mrb[0].mxu0 %v737
        %v804 = vpop.f32.mrb[0].mxu0
        %v805 = vadd.f32 0.0, %v804
        %v806 = vpop.f32.mrb[0].mxu0
        %v807 = vpop.f32.mrb[0].mxu0
        %v808 = vadd.f32 0.0, %v807
        %v809 = vpop.f32.mrb[0].mxu0
        %810 = vmatprep.mubr.bf16.mxu0 0
        %811 = vmatmul.mubr.bf16.gmra.mrb[0].mxu0 %v740
        %v812 = vpop.f32.mrb[0].mxu0
        %v813 = vadd.f32 0.0, %v812
        %v814 = vpop.f32.mrb[0].mxu0
        %v815 = vpop.f32.mrb[0].mxu0
        %v816 = vadd.f32 0.0, %v815
        %v817 = vpop.f32.mrb[0].mxu0
        %818 = vmatprep.mubr.bf16.mxu0 0
        %819 = vmatmul.mubr.bf16.gmra.mrb[0].mxu0 %v743
        %v820 = vpop.f32.mrb[0].mxu0
        %v821 = vadd.f32 0.0, %v820
        %v822 = vpop.f32.mrb[0].mxu0
        %v823 = vpop.f32.mrb[0].mxu0
        %v824 = vadd.f32 0.0, %v823
        %v825 = vpop.f32.mrb[0].mxu0
        %826 = vmatprep.mubr.bf16.mxu0 0
        %827 = vmatmul.mubr.bf16.gmra.mrb[0].mxu0 %v746
        %v828 = vpop.f32.mrb[0].mxu0
        %v829 = vadd.f32 0.0, %v828
        %v830 = vpop.f32.mrb[0].mxu0
        %v831 = vpop.f32.mrb[0].mxu0
        %v832 = vadd.f32 0.0, %v831
        %v833 = vpop.f32.mrb[0].mxu0
        %834 = vmatprep.mubr.bf16.mxu0 0
        %835 = vmatmul.mubr.bf16.gmra.mrb[0].mxu0 %v749
        %v836 = vpop.f32.mrb[0].mxu0
        %v837 = vadd.f32 0.0, %v836
        %v838 = vpop.f32.mrb[0].mxu0
        %v839 = vpop.f32.mrb[0].mxu0
        %v840 = vadd.f32 0.0, %v839
        %v841 = vpop.f32.mrb[0].mxu0
        %842 = vmatprep.mubr.bf16.mxu0 0
        %843 = vmatmul.mubr.bf16.gmra.mrb[0].mxu0 %v752
        %v844 = vpop.f32.mrb[0].mxu0
        %v845 = vadd.f32 0.0, %v844
        %v846 = vpop.f32.mrb[0].mxu0
        %v847 = vpop.f32.mrb[0].mxu0
        %v848 = vadd.f32 0.0, %v847
        %v849 = vpop.f32.mrb[0].mxu0
        %850 = vdwg.mxu0
        // Predicated region
        $region73: #{tpu_custom_call.1} parent=67 // pred_check
          %p851 = pneg %p622
        $region74: #{tpu_custom_call.1} parent=67 // pred_check_branch
          %853 = sbr.rel (%p851) target = $region76
        $region75: #{tpu_custom_call.1} parent=67 // pred_region
          %v854 = vld [vmem:[#allocation6] sm:$0x1]
          %v855 = vsel %vm395, %v789, 0.0
          %v856 = vsel %vm395, %v792, 0.0
          %v857 = vadd.f32 %v855, %v856
          %v858 = vsel %vm395, %v797, 0.0
          %v859 = vadd.f32 %v857, %v858
          %v860 = vsel %vm395, %v800, 0.0
          %v861 = vadd.f32 %v859, %v860
          %v862 = vsel %vm395, %v805, 0.0
          %v863 = vadd.f32 %v861, %v862
          %v864 = vsel %vm395, %v808, 0.0
          %v865 = vadd.f32 %v863, %v864
          %v866 = vsel %vm395, %v813, 0.0
          %v867 = vadd.f32 %v865, %v866
          %v868 = vsel %vm395, %v816, 0.0
          %v869 = vadd.f32 %v867, %v868
          %v870 = vsel %vm395, %v821, 0.0
          %v871 = vadd.f32 %v869, %v870
          %v872 = vsel %vm395, %v824, 0.0
          %v873 = vadd.f32 %v871, %v872
          %v874 = vsel %vm395, %v829, 0.0
          %v875 = vadd.f32 %v873, %v874
          %v876 = vsel %vm395, %v832, 0.0
          %v877 = vadd.f32 %v875, %v876
          %v878 = vsel %vm395, %v837, 0.0
          %v879 = vadd.f32 %v877, %v878
          %v880 = vsel %vm395, %v840, 0.0
          %v881 = vadd.f32 %v879, %v880
          %v882 = vsel %vm395, %v845, 0.0
          %v883 = vadd.f32 %v881, %v882
          %v884 = vsel %vm395, %v848, 0.0
          %v885 = vadd.f32 %v883, %v884
          %v886 = vrot.slane %v885, 4
          %v887 = vadd.f32 %v885, %v886
          %v888 = vrot.slane %v887, 2
          %v889 = vadd.f32 %v887, %v888
          %v890 = vrot.slane %v889, 1
          %v891 = vadd.f32 %v889, %v890
          %v892 = vadd.f32 %v854, %v891
          %vm893 = vcmask 122880
          %894 = vst.msk [vmem:[#allocation6] sm:$0x1] %vm893, %v892
          %v895 = vld [vmem:[#allocation7] sm:$0x1]
          %v896 = vmul.f32 %v789, %v789
          %v897 = vmul.f32 %v792, %v792
          %v898 = vmul.f32 %v797, %v797
          %v899 = vmul.f32 %v800, %v800
          %v900 = vmul.f32 %v805, %v805
          %v901 = vmul.f32 %v808, %v808
          %v902 = vmul.f32 %v813, %v813
          %v903 = vmul.f32 %v816, %v816
          %v904 = vmul.f32 %v821, %v821
          %v905 = vmul.f32 %v824, %v824
          %v906 = vmul.f32 %v829, %v829
          %v907 = vmul.f32 %v832, %v832
          %v908 = vmul.f32 %v837, %v837
          %v909 = vmul.f32 %v840, %v840
          %v910 = vmul.f32 %v845, %v845
          %v911 = vmul.f32 %v848, %v848
          %v912 = vsel %vm395, %v896, 0.0
          %v913 = vsel %vm395, %v897, 0.0
          %v914 = vadd.f32 %v912, %v913
          %v915 = vsel %vm395, %v898, 0.0
          %v916 = vadd.f32 %v914, %v915
          %v917 = vsel %vm395, %v899, 0.0
          %v918 = vadd.f32 %v916, %v917
          %v919 = vsel %vm395, %v900, 0.0
          %v920 = vadd.f32 %v918, %v919
          %v921 = vsel %vm395, %v901, 0.0
          %v922 = vadd.f32 %v920, %v921
          %v923 = vsel %vm395, %v902, 0.0
          %v924 = vadd.f32 %v922, %v923
          %v925 = vsel %vm395, %v903, 0.0
          %v926 = vadd.f32 %v924, %v925
          %v927 = vsel %vm395, %v904, 0.0
          %v928 = vadd.f32 %v926, %v927
          %v929 = vsel %vm395, %v905, 0.0
          %v930 = vadd.f32 %v928, %v929
          %v931 = vsel %vm395, %v906, 0.0
          %v932 = vadd.f32 %v930, %v931
          %v933 = vsel %vm395, %v907, 0.0
          %v934 = vadd.f32 %v932, %v933
          %v935 = vsel %vm395, %v908, 0.0
          %v936 = vadd.f32 %v934, %v935
          %v937 = vsel %vm395, %v909, 0.0
          %v938 = vadd.f32 %v936, %v937
          %v939 = vsel %vm395, %v910, 0.0
          %v940 = vadd.f32 %v938, %v939
          %v941 = vsel %vm395, %v911, 0.0
          %v942 = vadd.f32 %v940, %v941
          %v943 = vrot.slane %v942, 4
          %v944 = vadd.f32 %v942, %v943
          %v945 = vrot.slane %v944, 2
          %v946 = vadd.f32 %v944, %v945
          %v947 = vrot.slane %v946, 1
          %v948 = vadd.f32 %v946, %v947
          %v949 = vadd.f32 %v895, %v948
          %950 = vst.msk [vmem:[#allocation7] sm:$0x1] %vm893, %v949
        $region76: #{tpu_custom_call.1} parent=67 // pred_fallthru
          _
        %p951 = scmp.eq.s32.totalorder %s26, 2
        %p952 = pnand %p951, %p352
        %p953 = pneg %p952
        // Predicated region
        $region77: #{tpu_custom_call.1} parent=67 // pred_check
          _
        $region78: #{tpu_custom_call.1} parent=67 // pred_check_branch
          %955 = sbr.rel (%p952) target = $region80
        $region79: #{tpu_custom_call.1} parent=67 // pred_region
          %v956 = vld [vmem:[#allocation6] sm:$0x1]
          %v957 = vmul.f32 %v956, 0.00390625
          %v958 = vld [vmem:[#allocation7] sm:$0x1]
          %v959 = vmul.f32 %v958, 0.00390625
          %v960 = vmul.f32 %v957, %v957
          %v961 = vsub.f32 %v959, %v960
          %v962 = vld [vmem:[%s5] sm:$0x1]
          %v963 = vadd.f32 %v961, 1e-05
          %v964 = vrsqrt.pop %v963
          %v965 = vmul.f32 %v962, %v964
          %vm966 = vcmask 122880
          %967 = vst.msk [vmem:[#allocation8] sm:$0x1] %vm966, %v965
          %v968 = vld [vmem:[%s6] sm:$0x1]
          %v969 = vmul.f32 %v957, %v965
          %v970 = vsub.f32 %v968, %v969
          %971 = vst.msk [vmem:[#allocation9] sm:$0x1] %vm966, %v970
        $region80: #{tpu_custom_call.1} parent=67 // pred_fallthru
          _
        // Predicated region
        $region81: #{tpu_custom_call.1} parent=67 // pred_check
          %p972 = pneg %p951
        $region82: #{tpu_custom_call.1} parent=67 // pred_check_branch
          %974 = sbr.rel (%p972) target = $region84
        $region83: #{tpu_custom_call.1} parent=67 // pred_region
          %v975 = vld [vmem:[#allocation8] sm:$0x1]
          %v977 = vlaneseq
          %v978 = vshrl.u32 %v977, 7
          %v979 = vsub.s32 0, %v978
          %v980 = vrot.slane %v975, %v979
          %v982 = vmul.f32 %v789, %v980
          %v983 = vmul.f32 %v792, %v980
          %v984 = vmul.f32 %v797, %v980
          %v985 = vmul.f32 %v800, %v980
          %v986 = vmul.f32 %v805, %v980
          %v987 = vmul.f32 %v808, %v980
          %v988 = vmul.f32 %v813, %v980
          %v989 = vmul.f32 %v816, %v980
          %v990 = vmul.f32 %v821, %v980
          %v991 = vmul.f32 %v824, %v980
          %v992 = vmul.f32 %v829, %v980
          %v993 = vmul.f32 %v832, %v980
          %v994 = vmul.f32 %v837, %v980
          %v995 = vmul.f32 %v840, %v980
          %v996 = vmul.f32 %v845, %v980
          %v997 = vmul.f32 %v848, %v980
          %v998 = vld [vmem:[#allocation9] sm:$0x1]
          %v1000 = vlaneseq
          %v1001 = vshrl.u32 %v1000, 7
          %v1002 = vsub.s32 0, %v1001
          %v1003 = vrot.slane %v998, %v1002
          %v1005 = vadd.f32 %v982, %v1003
          %v1006 = vadd.f32 %v983, %v1003
          %v1007 = vadd.f32 %v984, %v1003
          %v1008 = vadd.f32 %v985, %v1003
          %v1009 = vadd.f32 %v986, %v1003
          %v1010 = vadd.f32 %v987, %v1003
          %v1011 = vadd.f32 %v988, %v1003
          %v1012 = vadd.f32 %v989, %v1003
          %v1013 = vadd.f32 %v990, %v1003
          %v1014 = vadd.f32 %v991, %v1003
          %v1015 = vadd.f32 %v992, %v1003
          %v1016 = vadd.f32 %v993, %v1003
          %v1017 = vadd.f32 %v994, %v1003
          %v1018 = vadd.f32 %v995, %v1003
          %v1019 = vadd.f32 %v996, %v1003
          %v1020 = vadd.f32 %v997, %v1003
          %v1021 = vmax.f32 %v1005, 0.0
          %v1022 = vmax.f32 %v1006, 0.0
          %v1023 = vmax.f32 %v1007, 0.0
          %v1024 = vmax.f32 %v1008, 0.0
          %v1025 = vmax.f32 %v1009, 0.0
          %v1026 = vmax.f32 %v1010, 0.0
          %v1027 = vmax.f32 %v1011, 0.0
          %v1028 = vmax.f32 %v1012, 0.0
          %v1029 = vmax.f32 %v1013, 0.0
          %v1030 = vmax.f32 %v1014, 0.0
          %v1031 = vmax.f32 %v1015, 0.0
          %v1032 = vmax.f32 %v1016, 0.0
          %v1033 = vmax.f32 %v1017, 0.0
          %v1034 = vmax.f32 %v1018, 0.0
          %v1035 = vmax.f32 %v1019, 0.0
          %v1036 = vmax.f32 %v1020, 0.0
          %v1037 = vld [vmem:[%s7] sm:$0x1]
          %v1039 = vlaneseq
          %v1040 = vshrl.u32 %v1039, 7
          %v1041 = vsub.s32 0, %v1040
          %v1042 = vrot.slane %v1037, %v1041
          %v1044 = vmul.f32 %v1021, %v1042
          %v1045 = vmul.f32 %v1022, %v1042
          %v1046 = vmul.f32 %v1023, %v1042
          %v1047 = vmul.f32 %v1024, %v1042
          %v1048 = vmul.f32 %v1025, %v1042
          %v1049 = vmul.f32 %v1026, %v1042
          %v1050 = vmul.f32 %v1027, %v1042
          %v1051 = vmul.f32 %v1028, %v1042
          %v1052 = vmul.f32 %v1029, %v1042
          %v1053 = vmul.f32 %v1030, %v1042
          %v1054 = vmul.f32 %v1031, %v1042
          %v1055 = vmul.f32 %v1032, %v1042
          %v1056 = vmul.f32 %v1033, %v1042
          %v1057 = vmul.f32 %v1034, %v1042
          %v1058 = vmul.f32 %v1035, %v1042
          %v1059 = vmul.f32 %v1036, %v1042
          %v1060 = vsel %vm395, %v1044, 0.0
          %1061 = vadd.xlane.f32.xlu0 %v1060
          %v1062 = vpop.xlane.xlu0 %1061
          %v1063 = vsel %vm395, %v1045, 0.0
          %1064 = vadd.xlane.f32.xlu0 %v1063
          %v1065 = vpop.xlane.xlu0 %1064
          %v1066 = vsel %vm395, %v1046, 0.0
          %1067 = vadd.xlane.f32.xlu0 %v1066
          %v1068 = vpop.xlane.xlu0 %1067
          %v1069 = vsel %vm395, %v1047, 0.0
          %1070 = vadd.xlane.f32.xlu0 %v1069
          %v1071 = vpop.xlane.xlu0 %1070
          %v1072 = vsel %vm395, %v1048, 0.0
          %1073 = vadd.xlane.f32.xlu0 %v1072
          %v1074 = vpop.xlane.xlu0 %1073
          %v1075 = vsel %vm395, %v1049, 0.0
          %1076 = vadd.xlane.f32.xlu0 %v1075
          %v1077 = vpop.xlane.xlu0 %1076
          %v1078 = vsel %vm395, %v1050, 0.0
          %1079 = vadd.xlane.f32.xlu0 %v1078
          %v1080 = vpop.xlane.xlu0 %1079
          %v1081 = vsel %vm395, %v1051, 0.0
          %1082 = vadd.xlane.f32.xlu0 %v1081
          %v1083 = vpop.xlane.xlu0 %1082
          %v1084 = vsel %vm395, %v1052, 0.0
          %1085 = vadd.xlane.f32.xlu0 %v1084
          %v1086 = vpop.xlane.xlu0 %1085
          %v1087 = vsel %vm395, %v1053, 0.0
          %1088 = vadd.xlane.f32.xlu0 %v1087
          %v1089 = vpop.xlane.xlu0 %1088
          %v1090 = vsel %vm395, %v1054, 0.0
          %1091 = vadd.xlane.f32.xlu0 %v1090
          %v1092 = vpop.xlane.xlu0 %1091
          %v1093 = vsel %vm395, %v1055, 0.0
          %1094 = vadd.xlane.f32.xlu0 %v1093
          %v1095 = vpop.xlane.xlu0 %1094
          %v1096 = vsel %vm395, %v1056, 0.0
          %1097 = vadd.xlane.f32.xlu0 %v1096
          %v1098 = vpop.xlane.xlu0 %1097
          %v1099 = vsel %vm395, %v1057, 0.0
          %1100 = vadd.xlane.f32.xlu0 %v1099
          %v1101 = vpop.xlane.xlu0 %1100
          %v1102 = vsel %vm395, %v1058, 0.0
          %1103 = vadd.xlane.f32.xlu0 %v1102
          %v1104 = vpop.xlane.xlu0 %1103
          %v1105 = vsel %vm395, %v1059, 0.0
          %1106 = vadd.xlane.f32.xlu0 %v1105
          %v1107 = vpop.xlane.xlu0 %1106
          %v1108 = vld [vmem:[#allocation10] sm:$0x1]
          %v1110 = vlaneseq
          %v1111 = vshrl.u32 %v1110, 7
          %v1112 = vsub.s32 0, %v1111
          %v1113 = vrot.slane %v1108, %v1112
          %v1115 = vadd.f32 %v1062, %v1113
          %v1116 = vadd.f32 %v1065, %v1113
          %v1117 = vadd.f32 %v1068, %v1113
          %v1118 = vadd.f32 %v1071, %v1113
          %v1119 = vadd.f32 %v1074, %v1113
          %v1120 = vadd.f32 %v1077, %v1113
          %v1121 = vadd.f32 %v1080, %v1113
          %v1122 = vadd.f32 %v1083, %v1113
          %v1123 = vadd.f32 %v1086, %v1113
          %v1124 = vadd.f32 %v1089, %v1113
          %v1125 = vadd.f32 %v1092, %v1113
          %v1126 = vadd.f32 %v1095, %v1113
          %v1127 = vadd.f32 %v1098, %v1113
          %v1128 = vadd.f32 %v1101, %v1113
          %v1129 = vadd.f32 %v1104, %v1113
          %v1130 = vadd.f32 %v1107, %v1113
          %vm1131 = vcmask 7168
          %1132 = vst.msk [vmem:[%s348] sm:$0xff] %vm1131, %v1115
          %1133 = vst.msk [vmem:[%s348 + $0x8] sm:$0xff] %vm1131, %v1116
          %1134 = vst.msk [vmem:[%s348 + $0x10] sm:$0xff] %vm1131, %v1117
          %1135 = vst.msk [vmem:[%s348 + $0x18] sm:$0xff] %vm1131, %v1118
          %1136 = vst.msk [vmem:[%s348 + $0x20] sm:$0xff] %vm1131, %v1119
          %1137 = vst.msk [vmem:[%s348 + $0x28] sm:$0xff] %vm1131, %v1120
          %1138 = vst.msk [vmem:[%s348 + $0x30] sm:$0xff] %vm1131, %v1121
          %1139 = vst.msk [vmem:[%s348 + $0x38] sm:$0xff] %vm1131, %v1122
          %1140 = vst.msk [vmem:[%s348 + $0x40] sm:$0xff] %vm1131, %v1123
          %1141 = vst.msk [vmem:[%s348 + $0x48] sm:$0xff] %vm1131, %v1124
          %1142 = vst.msk [vmem:[%s348 + $0x50] sm:$0xff] %vm1131, %v1125
          %1143 = vst.msk [vmem:[%s348 + $0x58] sm:$0xff] %vm1131, %v1126
          %1144 = vst.msk [vmem:[%s348 + $0x60] sm:$0xff] %vm1131, %v1127
          %1145 = vst.msk [vmem:[%s348 + $0x68] sm:$0xff] %vm1131, %v1128
          %1146 = vst.msk [vmem:[%s348 + $0x70] sm:$0xff] %vm1131, %v1129
          %1147 = vst.msk [vmem:[%s348 + $0x78] sm:$0xff] %vm1131, %v1130
        $region84: #{tpu_custom_call.1} parent=67 // pred_fallthru
          _
      $region68: #{tpu_custom_call.1} parent=55 // pred_fallthru
        _
      %s1148 = smul.u32 16, %s27
      %p1149 = scmp.lt.s32.totalorder %s1148, 31
      %s1150 = scalar_select %p1149, %s1148, 31
      %s1151 = smul.addr %s1150, 8
      %s1152 = scalar_lea.vmem %s9, %s1151
      // Predicated region
      $region85: #{tpu_custom_call.1} parent=55 // pred_check
        %p1153 = pneg %p246
      $region86: #{tpu_custom_call.1} parent=55 // pred_check_branch
        %1155 = sbr.rel (%p1153) target = $region88
      $region87: #{tpu_custom_call.1} parent=55 // pred_region
        %s1156 = smul.u32 16, %s27
      $region88: #{tpu_custom_call.1} parent=55 // pred_fallthru
        _
    $region56: #{tpu_custom_call.1} parent=5 // pred_fallthru
      _
    %p1157 = scmp.le.s32.totalorder 2, %s17
    // Predicated region
    $region89: #{tpu_custom_call.1} parent=5 // pred_check
      %p1158 = pneg %p1157
    $region90: #{tpu_custom_call.1} parent=5 // pred_check_branch
      %1160 = sbr.rel (%p1158) target = $region92
    $region91: #{tpu_custom_call.1} parent=5 // pred_region
      %s1161 = ssub.s32 %s17, 2
      // Predicated region
      $region93: #{tpu_custom_call.1} parent=91 // pred_check
        %p1162 = pneg %p252
      $region94: #{tpu_custom_call.1} parent=91 // pred_check_branch
        %1164 = sbr.rel (%p1162) target = $region96
      $region95: #{tpu_custom_call.1} parent=91 // pred_region
        %s1165 = smul.u32 16, %s29
        %p1166 = scmp.lt.s32.totalorder %s1165, 31
        %s1167 = scalar_select %p1166, %s1165, 31
        %s1168 = smul.addr %s1167, 8
        %s1169 = scalar_lea.vmem %s9, %s1168
      $region96: #{tpu_custom_call.1} parent=91 // pred_fallthru
        _
    $region92: #{tpu_custom_call.1} parent=5 // pred_fallthru
      _
  $region6: #{tpu_custom_call.1} parent=0 // loop_footer
    %s21 = sadd.s32 1, %s17
  $region7: #{tpu_custom_call.1} parent=0 // loop_footer_branch
    %16 = sbr.rel target = $region3
  $region8: #{tpu_custom_call.1} parent=0 // loop_exit
    _

</llo_original>
